<compile_context>
chip_gen: v7x
topology: tpu7x:2x2x1
jax: 0.10.0
libtpu: 0.0.40
codegen_flags: <defaults>
</compile_context>

<pallas_src>
import math

import jax
import jax.numpy as jnp
import numpy as np
from jax.experimental import pallas as pl
from jax.experimental.pallas import tpu as pltpu

B = 2            # batch_size
Q = 16           # queries_num
HIDDEN = 32      # hidden_size
NUM_HEADS = 4
HEAD_DIM = HIDDEN // NUM_HEADS   # 8
LN_EPS = 1e-5
KEY_NEG = -100000000.0           # matches reference masked_fill value
BLOCK_NEG = -1000000000.0        # cross-batch structural mask (finite, not -inf)
PACK_ROWS = 88
PACK_LANES = 128
IN_LANES = 128
OUT_LANES = 128


def _gelu_exact(x):
    # torch.nn.GELU() default == exact erf formulation
    return 0.5 * x * (1.0 + jax.lax.erf(x * (1.0 / math.sqrt(2.0))))


def _block_diag(block, n):
    r, c = block.shape
    M = jnp.zeros((n * r, n * c), jnp.float32)
    for i in range(n):
        M = M.at[i * r:(i + 1) * r, i * c:(i + 1) * c].set(block)
    return M


def pack_params(params):
    """One-time packing of all 12 params into a single lane-dense f32 slab.

    Per-head weights (locator / anchor_attn) are stored block-diagonally so the
    kernel can apply them to lane-packed [BQ, N*D] tensors with one matmul each.
    """
    (W_t, b_t, W_loc, b_loc, W_a1, b_a1, W_a2, b_a2, W_o, b_o, gamma, beta) = params
    N, D, H = NUM_HEADS, HEAD_DIM, HIDDEN
    P = jnp.zeros((PACK_ROWS, PACK_LANES), jnp.float32)
    P = P.at[0:H, 0:3 * N * D].set(W_t)                    # transform weight  [32, 96]
    P = P.at[32:64, 0:H].set(W_o)                          # trans_out weight  [32, 32]
    P = P.at[32:64, 32:40].set(_block_diag(W_loc, N))      # locator  (block-diag) [32, 8]
    P = P.at[32:64, 40:56].set(_block_diag(W_a1, N))       # anchor[0] (block-diag) [32, 16]
    P = P.at[32:48, 56:64].set(_block_diag(W_a2, N))       # anchor[2] (block-diag) [16, 8]
    P = P.at[64, 0:3 * N * D].set(b_t[0])
    P = P.at[72, 0:H].set(b_o[0])
    P = P.at[72, 32:64].set(gamma[0])
    P = P.at[72, 64:96].set(beta[0])
    P = P.at[80, 0:2 * N].set(jnp.tile(b_loc[0], N))
    P = P.at[80, 2 * N:6 * N].set(jnp.tile(b_a1[0], N))
    P = P.at[80, 6 * N:8 * N].set(jnp.tile(b_a2[0], N))
    return P


def make_kernel(bq):
    """Kernel processing the whole [bq, HIDDEN] problem in one grid step."""
    N, D, H = NUM_HEADS, HEAD_DIM, HIDDEN
    inv_factor = 1.0 / math.sqrt(D)
    dn = (((1,), (1,)), ((), ()))   # contract on D for both operands (q @ k^T, no transpose op)

    def kernel(in_ref, p_ref, out_ref):
        # ---- lane-dense input slab: [ queries | attention bias | locations | pad ] ----
        x = in_ref[:, 0:H]                           # [BQ, 32]
        bias = in_ref[:, H:H + bq]                   # [BQ, BQ] additive (structural + key mask)
        loc = in_ref[:, H + bq:H + bq + 2]           # [BQ, 2]

        # ---- packed parameters (static slices of one VMEM slab) ----
        W_t = p_ref[0:32, 0:96]
        W_o = p_ref[32:64, 0:32]
        W_loc = p_ref[32:64, 32:40]                  # block-diag per head  [N*D, 2N]
        W_a1 = p_ref[32:64, 40:56]                   # block-diag per head  [N*D, 4N]
        W_a2 = p_ref[32:48, 56:64]                   # block-diag per head  [4N, 2N]
        b_t = p_ref[64:65, 0:96]
        b_o = p_ref[72:73, 0:32]
        gamma = p_ref[72:73, 32:64]
        beta = p_ref[72:73, 64:96]
        b_loc = p_ref[80:81, 0:2 * N]
        b_a1 = p_ref[80:81, 2 * N:6 * N]
        b_a2 = p_ref[80:81, 6 * N:8 * N]

        # ---- fused QKV projection (one matmul) ----
        qkv = jnp.dot(x, W_t, preferred_element_type=jnp.float32) + b_t     # [BQ, 3*N*D]
        q_lane = qkv[:, 0:N * D]                                             # [BQ, N*D]

        # ---- per-head attention: no relayout, no K transpose, deferred normalization ----
        outs = []
        for n in range(N):
            q_n = qkv[:, n * D:(n + 1) * D]                                  # [BQ, D]
            k_n = qkv[:, (N + n) * D:(N + n + 1) * D]
            v_n = qkv[:, (2 * N + n) * D:(2 * N + n + 1) * D]
            s = jax.lax.dot_general(q_n, k_n, dn,
                                    preferred_element_type=jnp.float32)      # [BQ, BQ]
            s = s * inv_factor + bias
            e = jnp.exp(s - jnp.max(s, axis=-1, keepdims=True))
            o = jnp.dot(e, v_n, preferred_element_type=jnp.float32)          # [BQ, D]
            inv_l = pl.reciprocal(jnp.sum(e, axis=-1, keepdims=True), approx=True)
            outs.append(o * inv_l)
        out_lane = jnp.concatenate(outs, axis=1)                             # [BQ, N*D]

        # ---- lane-packed locator offsets (synthetic nn.Locator ~= Linear(D, 2)) ----
        off_lane = jnp.dot(q_lane, W_loc, preferred_element_type=jnp.float32) + b_loc   # [BQ, 2N]

        # ---- lane-packed anchor_attn: Linear(D,D//2) -> GELU -> Linear(D//2,2) ----
        h1 = _gelu_exact(jnp.dot(out_lane, W_a1, preferred_element_type=jnp.float32) + b_a1)  # [BQ,4N]
        sc_lane = jnp.dot(h1, W_a2, preferred_element_type=jnp.float32) + b_a2                # [BQ,2N]

        # ---- output projection + residual + LayerNorm (rsqrt on EUP; dropout = identity) ----
        y = jnp.dot(out_lane, W_o, preferred_element_type=jnp.float32) + b_o + x   # [BQ, H]
        mean = jnp.mean(y, axis=-1, keepdims=True)
        var = jnp.mean((y - mean) ** 2, axis=-1, keepdims=True)
        q_out = (y - mean) * jax.lax.rsqrt(var + LN_EPS) * gamma + beta

        # ---- locations: softmax over heads on lane-packed [BQ, 2] slices ----
        scs = [sc_lane[:, 2 * n:2 * n + 2] for n in range(N)]
        offs = [off_lane[:, 2 * n:2 * n + 2] for n in range(N)]
        m = scs[0]
        for n in range(1, N):
            m = jnp.maximum(m, scs[n])
        es = [jnp.exp(scs[n] - m) for n in range(N)]
        denom = es[0]
        for n in range(1, N):
            denom = denom + es[n]
        inv_denom = pl.reciprocal(denom, approx=True)
        loc_acc = (loc + offs[0]) * es[0]
        for n in range(1, N):
            loc_acc = loc_acc + (loc + offs[n]) * es[n]
        loc_out = loc_acc * inv_denom                                        # [BQ, 2]

        # ---- single lane-dense store: [ q_out | loc_out | zero pad ] ----
        pad = jnp.zeros((bq, OUT_LANES - H - 2), jnp.float32)
        out_ref[...] = jnp.concatenate([q_out, loc_out, pad], axis=1)

    return kernel


def spatial_attention_block(queries, locations, masks, packed_params):
    B_, Q_, H_ = queries.shape
    BQ = B_ * Q_

    # Combined structural (same-batch) + key mask as one finite additive bias.
    row_blk = jnp.arange(BQ, dtype=jnp.int32)[:, None] // Q_
    col_blk = jnp.arange(BQ, dtype=jnp.int32)[None, :] // Q_
    key_valid = masks.reshape(BQ)
    bias = jnp.where(row_blk == col_blk,
                     jnp.where(key_valid[None, :], 0.0, KEY_NEG),
                     BLOCK_NEG).astype(jnp.float32)                         # [BQ, BQ]

    # Single lane-dense input slab: [ queries | bias | locations | pad ].
    x2d = queries.reshape(BQ, H_).astype(jnp.float32)
    loc2d = locations.reshape(BQ, 2).astype(jnp.float32)
    pad = jnp.zeros((BQ, IN_LANES - H_ - BQ - 2), jnp.float32)
    slab = jnp.concatenate([x2d, bias, loc2d, pad], axis=1)                 # [BQ, 128]

    out = pl.pallas_call(
        make_kernel(BQ),
        grid=(1,),
        in_specs=[
            pl.BlockSpec((BQ, IN_LANES), lambda g: (0, 0)),                 # fused data slab
            pl.BlockSpec((PACK_ROWS, PACK_LANES), lambda g: (0, 0)),        # packed params
        ],
        out_specs=pl.BlockSpec((BQ, OUT_LANES), lambda g: (0, 0)),
        out_shape=jax.ShapeDtypeStruct((BQ, OUT_LANES), jnp.float32),
        compiler_params=pltpu.CompilerParams(dimension_semantics=("arbitrary",)),
    )(slab, packed_params)

    q_out = out[:, :H_].reshape(B_, Q_, H_)
    loc_out = out[:, H_:H_ + 2].reshape(B_, Q_, 2)
    return q_out, loc_out


def reference_forward(queries, locations, masks, params):
    """Pure-JAX mirror of the PyTorch forward (no_spatial=True, eval mode)."""
    (W_t, b_t, W_loc, b_loc, W_a1, b_a1, W_a2, b_a2, W_o, b_o, gamma, beta) = params
    B_, Q_, H_ = queries.shape
    N, D = NUM_HEADS, HEAD_DIM

    qkv = queries @ W_t + b_t                                     # [B,Q,3*N*D]
    qkv = qkv.reshape(B_, Q_, 3 * N, D).transpose(0, 2, 1, 3)     # [B,3N,Q,D]
    qh, kh, vh = qkv[:, :N], qkv[:, N:2 * N], qkv[:, 2 * N:]

    score = jnp.einsum('bnqh,bnvh->bnqv', qh, kh) / math.sqrt(D)
    score = jnp.where(masks[:, None, None, :], score, KEY_NEG)

    offsets = qh @ W_loc + b_loc                                  # [B,N,Q,2]
    locs = locations[:, None] + offsets

    attn = jax.nn.softmax(score, axis=-1)
    out_h = jnp.einsum('bnqv,bnvh->bqnh', attn, vh)               # [B,Q,N,D]

    h1 = _gelu_exact(out_h @ W_a1 + b_a1)
    heads_scores = h1 @ W_a2 + b_a2                               # [B,Q,N,2]
    locs_w = jax.nn.softmax(heads_scores, axis=-2)
    locations_out = jnp.einsum('bnqc,bqnc->bqc', locs, locs_w)

    y = out_h.reshape(B_, Q_, N * D) @ W_o + b_o + queries
    mean = y.mean(-1, keepdims=True)
    var = ((y - mean) ** 2).mean(-1, keepdims=True)
    q_out = (y - mean) / jnp.sqrt(var + LN_EPS) * gamma + beta
    return q_out, locations_out


def init_params(key):
    ks = jax.random.split(key, 12)
    N, D, H = NUM_HEADS, HEAD_DIM, HIDDEN

    def w(k, shape, scale):
        return jax.random.normal(k, shape, jnp.float32) * scale

    return [
        w(ks[0], (H, 3 * N * D), 0.1),    # W_t   (transform Linear)
        w(ks[1], (1, 3 * N * D), 0.05),   # b_t
        w(ks[2], (D, 2), 0.1),            # W_loc (synthetic Locator offsets)
        w(ks[3], (1, 2), 0.05),           # b_loc
        w(ks[4], (D, D // 2), 0.2),       # W_a1  (anchor_attn[0])
        w(ks[5], (1, D // 2), 0.05),      # b_a1
        w(ks[6], (D // 2, 2), 0.2),       # W_a2  (anchor_attn[2])
        w(ks[7], (1, 2), 0.05),           # b_a2
        w(ks[8], (N * D, H), 0.1),        # W_o   (trans_out Linear)
        w(ks[9], (1, H), 0.05),           # b_o
        1.0 + w(ks[10], (1, H), 0.05),    # LayerNorm gamma
        w(ks[11], (1, H), 0.05),          # LayerNorm beta
    ]


if __name__ == "__main__":
    key = jax.random.PRNGKey(0)
    k_q, k_loc, k_p = jax.random.split(key, 3)

    queries = jax.random.normal(k_q, (B, Q, HIDDEN), jnp.float32)
    locations = jax.random.normal(k_loc, (B, Q, 2), jnp.float32)
    lengths = jnp.array([Q, Q - 5], dtype=jnp.int32)
    masks = jnp.arange(Q)[None, :] < lengths[:, None]            # [B, Q] bool

    params = init_params(k_p)
    packed = pack_params(params)     # one-time parameter packing (single DMA slab)

    q_out, loc_out = spatial_attention_block(queries, locations, masks, packed)
    q_out = jax.block_until_ready(q_out)
    loc_out = jax.block_until_ready(loc_out)

    q_ref, loc_ref = reference_forward(queries, locations, masks, params)

    assert q_out.shape == (B, Q, HIDDEN) and loc_out.shape == (B, Q, 2)
    np.testing.assert_allclose(np.asarray(q_out), np.asarray(q_ref), rtol=2e-3, atol=2e-3)
    np.testing.assert_allclose(np.asarray(loc_out), np.asarray(loc_ref), rtol=2e-3, atol=2e-3)

    print("KERNEL_OK")
</pallas_src>

<mosaic_0001>
module attributes {stable_mosaic.version = 11 : i64} {
  func.func @kernel(%arg0: i32, %arg1: memref<32x128xf32, #tpu.memory_space<vmem>>, %arg2: memref<88x128xf32, #tpu.memory_space<vmem>>, %arg3: memref<32x128xf32, #tpu.memory_space<vmem>>) attributes {dimension_semantics = [#tpu.dimension_semantics<arbitrary>], iteration_bounds = array<i64: 1>, scalar_prefetch = 0 : i64, scratch_operands = 0 : i64, tpu.core_type = #tpu.core_type<tc>, window_params = [{pipeline_mode = #tpu.pipeline_mode<synchronous>, transform_indices = @transform_0, window_bounds = array<i64: 32, 128>}, {pipeline_mode = #tpu.pipeline_mode<synchronous>, transform_indices = @transform_1, window_bounds = array<i64: 88, 128>}, {pipeline_mode = #tpu.pipeline_mode<synchronous>, transform_indices = @transform_2, window_bounds = array<i64: 32, 128>}]} {
    %c0 = arith.constant 0 : index
    %c0_0 = arith.constant 0 : index
    %0 = vector.load %arg1[%c0, %c0_0] : memref<32x128xf32, #tpu.memory_space<vmem>>, vector<32x32xf32>
    %c0_1 = arith.constant 0 : index
    %c32 = arith.constant 32 : index
    %1 = vector.load %arg1[%c0_1, %c32] : memref<32x128xf32, #tpu.memory_space<vmem>>, vector<32x32xf32>
    %c0_2 = arith.constant 0 : index
    %c64 = arith.constant 64 : index
    %2 = vector.load %arg1[%c0_2, %c64] : memref<32x128xf32, #tpu.memory_space<vmem>>, vector<32x2xf32>
    %c0_3 = arith.constant 0 : index
    %c0_4 = arith.constant 0 : index
    %3 = vector.load %arg2[%c0_3, %c0_4] : memref<88x128xf32, #tpu.memory_space<vmem>>, vector<32x96xf32>
    %c32_5 = arith.constant 32 : index
    %c0_6 = arith.constant 0 : index
    %4 = vector.load %arg2[%c32_5, %c0_6] : memref<88x128xf32, #tpu.memory_space<vmem>>, vector<32x32xf32>
    %c32_7 = arith.constant 32 : index
    %c32_8 = arith.constant 32 : index
    %5 = vector.load %arg2[%c32_7, %c32_8] : memref<88x128xf32, #tpu.memory_space<vmem>>, vector<32x8xf32>
    %c32_9 = arith.constant 32 : index
    %c40 = arith.constant 40 : index
    %6 = vector.load %arg2[%c32_9, %c40] : memref<88x128xf32, #tpu.memory_space<vmem>>, vector<32x16xf32>
    %c32_10 = arith.constant 32 : index
    %c56 = arith.constant 56 : index
    %7 = vector.load %arg2[%c32_10, %c56] : memref<88x128xf32, #tpu.memory_space<vmem>>, vector<16x8xf32>
    %c64_11 = arith.constant 64 : index
    %c0_12 = arith.constant 0 : index
    %8 = vector.load %arg2[%c64_11, %c0_12] : memref<88x128xf32, #tpu.memory_space<vmem>>, vector<1x96xf32>
    %c72 = arith.constant 72 : index
    %c0_13 = arith.constant 0 : index
    %9 = vector.load %arg2[%c72, %c0_13] : memref<88x128xf32, #tpu.memory_space<vmem>>, vector<1x32xf32>
    %c72_14 = arith.constant 72 : index
    %c32_15 = arith.constant 32 : index
    %10 = vector.load %arg2[%c72_14, %c32_15] : memref<88x128xf32, #tpu.memory_space<vmem>>, vector<1x32xf32>
    %c72_16 = arith.constant 72 : index
    %c64_17 = arith.constant 64 : index
    %11 = vector.load %arg2[%c72_16, %c64_17] : memref<88x128xf32, #tpu.memory_space<vmem>>, vector<1x32xf32>
    %c80 = arith.constant 80 : index
    %c0_18 = arith.constant 0 : index
    %12 = vector.load %arg2[%c80, %c0_18] : memref<88x128xf32, #tpu.memory_space<vmem>>, vector<1x8xf32>
    %c80_19 = arith.constant 80 : index
    %c8 = arith.constant 8 : index
    %13 = vector.load %arg2[%c80_19, %c8] : memref<88x128xf32, #tpu.memory_space<vmem>>, vector<1x16xf32>
    %c80_20 = arith.constant 80 : index
    %c24 = arith.constant 24 : index
    %14 = vector.load %arg2[%c80_20, %c24] : memref<88x128xf32, #tpu.memory_space<vmem>>, vector<1x8xf32>
    %cst = arith.constant dense<0.000000e+00> : vector<32x96xf32>
    %15 = tpu.matmul %0, %3, %cst {dimension_numbers = #tpu.dot_dimension_numbers<[1], [0], [0], [1], [0, 0, 1, 1], [], []>} : vector<32x32xf32>, vector<32x96xf32>, vector<32x96xf32> -> vector<32x96xf32>
    %16 = vector.broadcast %8 : vector<1x96xf32> to vector<32x96xf32>
    %17 = arith.addf %15, %16 : vector<32x96xf32>
    %18 = vector.extract_strided_slice %17 {offsets = [0, 0], sizes = [32, 32], strides = [1, 1]} : vector<32x96xf32> to vector<32x32xf32>
    %19 = vector.extract_strided_slice %17 {offsets = [0, 0], sizes = [32, 8], strides = [1, 1]} : vector<32x96xf32> to vector<32x8xf32>
    %20 = vector.extract_strided_slice %17 {offsets = [0, 32], sizes = [32, 8], strides = [1, 1]} : vector<32x96xf32> to vector<32x8xf32>
    %21 = vector.extract_strided_slice %17 {offsets = [0, 64], sizes = [32, 8], strides = [1, 1]} : vector<32x96xf32> to vector<32x8xf32>
    %cst_21 = arith.constant dense<0.000000e+00> : vector<32x32xf32>
    %22 = tpu.matmul %19, %20, %cst_21 {dimension_numbers = #tpu.dot_dimension_numbers<[1], [1], [0], [0], [0, 0, 1, 0], [], []>} : vector<32x8xf32>, vector<32x8xf32>, vector<32x32xf32> -> vector<32x32xf32>
    %cst_22 = arith.constant 0.353553385 : f32
    %23 = vector.broadcast %cst_22 : f32 to vector<32x32xf32>
    %24 = arith.mulf %22, %23 : vector<32x32xf32>
    %25 = arith.addf %24, %1 : vector<32x32xf32>
    %cst_23 = arith.constant dense<0xFF800000> : vector<32xf32>
    %26 = vector.multi_reduction <maximumf>, %25, %cst_23 [1] : vector<32x32xf32> to vector<32xf32>
    %27 = vector.shape_cast %26 : vector<32xf32> to vector<32x1xf32>
    %28 = vector.broadcast %27 : vector<32x1xf32> to vector<32x32xf32>
    %29 = arith.subf %25, %28 : vector<32x32xf32>
    %30 = math.exp %29 : vector<32x32xf32>
    %cst_24 = arith.constant dense<0.000000e+00> : vector<32x8xf32>
    %31 = tpu.matmul %30, %21, %cst_24 {dimension_numbers = #tpu.dot_dimension_numbers<[1], [0], [0], [1], [0, 0, 1, 1], [], []>} : vector<32x32xf32>, vector<32x8xf32>, vector<32x8xf32> -> vector<32x8xf32>
    %cst_25 = arith.constant dense<0.000000e+00> : vector<32xf32>
    %32 = vector.multi_reduction <add>, %30, %cst_25 [1] : vector<32x32xf32> to vector<32xf32>
    %33 = vector.shape_cast %32 : vector<32xf32> to vector<32x1xf32>
    %34 = tpu.reciprocal %33 {approx = true} : vector<32x1xf32> -> vector<32x1xf32>
    %35 = vector.broadcast %34 : vector<32x1xf32> to vector<32x8xf32>
    %36 = arith.mulf %31, %35 : vector<32x8xf32>
    %37 = vector.extract_strided_slice %17 {offsets = [0, 8], sizes = [32, 8], strides = [1, 1]} : vector<32x96xf32> to vector<32x8xf32>
    %38 = vector.extract_strided_slice %17 {offsets = [0, 40], sizes = [32, 8], strides = [1, 1]} : vector<32x96xf32> to vector<32x8xf32>
    %39 = vector.extract_strided_slice %17 {offsets = [0, 72], sizes = [32, 8], strides = [1, 1]} : vector<32x96xf32> to vector<32x8xf32>
    %cst_26 = arith.constant dense<0.000000e+00> : vector<32x32xf32>
    %40 = tpu.matmul %37, %38, %cst_26 {dimension_numbers = #tpu.dot_dimension_numbers<[1], [1], [0], [0], [0, 0, 1, 0], [], []>} : vector<32x8xf32>, vector<32x8xf32>, vector<32x32xf32> -> vector<32x32xf32>
    %cst_27 = arith.constant 0.353553385 : f32
    %41 = vector.broadcast %cst_27 : f32 to vector<32x32xf32>
    %42 = arith.mulf %40, %41 : vector<32x32xf32>
    %43 = arith.addf %42, %1 : vector<32x32xf32>
    %cst_28 = arith.constant dense<0xFF800000> : vector<32xf32>
    %44 = vector.multi_reduction <maximumf>, %43, %cst_28 [1] : vector<32x32xf32> to vector<32xf32>
    %45 = vector.shape_cast %44 : vector<32xf32> to vector<32x1xf32>
    %46 = vector.broadcast %45 : vector<32x1xf32> to vector<32x32xf32>
    %47 = arith.subf %43, %46 : vector<32x32xf32>
    %48 = math.exp %47 : vector<32x32xf32>
    %cst_29 = arith.constant dense<0.000000e+00> : vector<32x8xf32>
    %49 = tpu.matmul %48, %39, %cst_29 {dimension_numbers = #tpu.dot_dimension_numbers<[1], [0], [0], [1], [0, 0, 1, 1], [], []>} : vector<32x32xf32>, vector<32x8xf32>, vector<32x8xf32> -> vector<32x8xf32>
    %cst_30 = arith.constant dense<0.000000e+00> : vector<32xf32>
    %50 = vector.multi_reduction <add>, %48, %cst_30 [1] : vector<32x32xf32> to vector<32xf32>
    %51 = vector.shape_cast %50 : vector<32xf32> to vector<32x1xf32>
    %52 = tpu.reciprocal %51 {approx = true} : vector<32x1xf32> -> vector<32x1xf32>
    %53 = vector.broadcast %52 : vector<32x1xf32> to vector<32x8xf32>
    %54 = arith.mulf %49, %53 : vector<32x8xf32>
    %55 = vector.extract_strided_slice %17 {offsets = [0, 16], sizes = [32, 8], strides = [1, 1]} : vector<32x96xf32> to vector<32x8xf32>
    %56 = vector.extract_strided_slice %17 {offsets = [0, 48], sizes = [32, 8], strides = [1, 1]} : vector<32x96xf32> to vector<32x8xf32>
    %57 = vector.extract_strided_slice %17 {offsets = [0, 80], sizes = [32, 8], strides = [1, 1]} : vector<32x96xf32> to vector<32x8xf32>
    %cst_31 = arith.constant dense<0.000000e+00> : vector<32x32xf32>
    %58 = tpu.matmul %55, %56, %cst_31 {dimension_numbers = #tpu.dot_dimension_numbers<[1], [1], [0], [0], [0, 0, 1, 0], [], []>} : vector<32x8xf32>, vector<32x8xf32>, vector<32x32xf32> -> vector<32x32xf32>
    %cst_32 = arith.constant 0.353553385 : f32
    %59 = vector.broadcast %cst_32 : f32 to vector<32x32xf32>
    %60 = arith.mulf %58, %59 : vector<32x32xf32>
    %61 = arith.addf %60, %1 : vector<32x32xf32>
    %cst_33 = arith.constant dense<0xFF800000> : vector<32xf32>
    %62 = vector.multi_reduction <maximumf>, %61, %cst_33 [1] : vector<32x32xf32> to vector<32xf32>
    %63 = vector.shape_cast %62 : vector<32xf32> to vector<32x1xf32>
    %64 = vector.broadcast %63 : vector<32x1xf32> to vector<32x32xf32>
    %65 = arith.subf %61, %64 : vector<32x32xf32>
    %66 = math.exp %65 : vector<32x32xf32>
    %cst_34 = arith.constant dense<0.000000e+00> : vector<32x8xf32>
    %67 = tpu.matmul %66, %57, %cst_34 {dimension_numbers = #tpu.dot_dimension_numbers<[1], [0], [0], [1], [0, 0, 1, 1], [], []>} : vector<32x32xf32>, vector<32x8xf32>, vector<32x8xf32> -> vector<32x8xf32>
    %cst_35 = arith.constant dense<0.000000e+00> : vector<32xf32>
    %68 = vector.multi_reduction <add>, %66, %cst_35 [1] : vector<32x32xf32> to vector<32xf32>
    %69 = vector.shape_cast %68 : vector<32xf32> to vector<32x1xf32>
    %70 = tpu.reciprocal %69 {approx = true} : vector<32x1xf32> -> vector<32x1xf32>
    %71 = vector.broadcast %70 : vector<32x1xf32> to vector<32x8xf32>
    %72 = arith.mulf %67, %71 : vector<32x8xf32>
    %73 = vector.extract_strided_slice %17 {offsets = [0, 24], sizes = [32, 8], strides = [1, 1]} : vector<32x96xf32> to vector<32x8xf32>
    %74 = vector.extract_strided_slice %17 {offsets = [0, 56], sizes = [32, 8], strides = [1, 1]} : vector<32x96xf32> to vector<32x8xf32>
    %75 = vector.extract_strided_slice %17 {offsets = [0, 88], sizes = [32, 8], strides = [1, 1]} : vector<32x96xf32> to vector<32x8xf32>
    %cst_36 = arith.constant dense<0.000000e+00> : vector<32x32xf32>
    %76 = tpu.matmul %73, %74, %cst_36 {dimension_numbers = #tpu.dot_dimension_numbers<[1], [1], [0], [0], [0, 0, 1, 0], [], []>} : vector<32x8xf32>, vector<32x8xf32>, vector<32x32xf32> -> vector<32x32xf32>
    %cst_37 = arith.constant 0.353553385 : f32
    %77 = vector.broadcast %cst_37 : f32 to vector<32x32xf32>
    %78 = arith.mulf %76, %77 : vector<32x32xf32>
    %79 = arith.addf %78, %1 : vector<32x32xf32>
    %cst_38 = arith.constant dense<0xFF800000> : vector<32xf32>
    %80 = vector.multi_reduction <maximumf>, %79, %cst_38 [1] : vector<32x32xf32> to vector<32xf32>
    %81 = vector.shape_cast %80 : vector<32xf32> to vector<32x1xf32>
    %82 = vector.broadcast %81 : vector<32x1xf32> to vector<32x32xf32>
    %83 = arith.subf %79, %82 : vector<32x32xf32>
    %84 = math.exp %83 : vector<32x32xf32>
    %cst_39 = arith.constant dense<0.000000e+00> : vector<32x8xf32>
    %85 = tpu.matmul %84, %75, %cst_39 {dimension_numbers = #tpu.dot_dimension_numbers<[1], [0], [0], [1], [0, 0, 1, 1], [], []>} : vector<32x32xf32>, vector<32x8xf32>, vector<32x8xf32> -> vector<32x8xf32>
    %cst_40 = arith.constant dense<0.000000e+00> : vector<32xf32>
    %86 = vector.multi_reduction <add>, %84, %cst_40 [1] : vector<32x32xf32> to vector<32xf32>
    %87 = vector.shape_cast %86 : vector<32xf32> to vector<32x1xf32>
    %88 = tpu.reciprocal %87 {approx = true} : vector<32x1xf32> -> vector<32x1xf32>
    %89 = vector.broadcast %88 : vector<32x1xf32> to vector<32x8xf32>
    %90 = arith.mulf %85, %89 : vector<32x8xf32>
    %91 = tpu.concatenate %36, %54, %72, %90 in 1 : vector<32x8xf32>, vector<32x8xf32>, vector<32x8xf32>, vector<32x8xf32> -> vector<32x32xf32>
    %cst_41 = arith.constant dense<0.000000e+00> : vector<32x8xf32>
    %92 = tpu.matmul %18, %5, %cst_41 {dimension_numbers = #tpu.dot_dimension_numbers<[1], [0], [0], [1], [0, 0, 1, 1], [], []>} : vector<32x32xf32>, vector<32x8xf32>, vector<32x8xf32> -> vector<32x8xf32>
    %93 = vector.broadcast %12 : vector<1x8xf32> to vector<32x8xf32>
    %94 = arith.addf %92, %93 : vector<32x8xf32>
    %cst_42 = arith.constant dense<0.000000e+00> : vector<32x16xf32>
    %95 = tpu.matmul %91, %6, %cst_42 {dimension_numbers = #tpu.dot_dimension_numbers<[1], [0], [0], [1], [0, 0, 1, 1], [], []>} : vector<32x32xf32>, vector<32x16xf32>, vector<32x16xf32> -> vector<32x16xf32>
    %96 = vector.broadcast %13 : vector<1x16xf32> to vector<32x16xf32>
    %97 = arith.addf %95, %96 : vector<32x16xf32>
    %cst_43 = arith.constant 5.000000e-01 : f32
    %98 = vector.broadcast %cst_43 : f32 to vector<32x16xf32>
    %99 = arith.mulf %98, %97 : vector<32x16xf32>
    %cst_44 = arith.constant 0.707106769 : f32
    %100 = vector.broadcast %cst_44 : f32 to vector<32x16xf32>
    %101 = arith.mulf %97, %100 : vector<32x16xf32>
    %102 = math.erf %101 : vector<32x16xf32>
    %cst_45 = arith.constant 1.000000e+00 : f32
    %103 = vector.broadcast %cst_45 : f32 to vector<32x16xf32>
    %104 = arith.addf %103, %102 : vector<32x16xf32>
    %105 = arith.mulf %99, %104 : vector<32x16xf32>
    %cst_46 = arith.constant dense<0.000000e+00> : vector<32x8xf32>
    %106 = tpu.matmul %105, %7, %cst_46 {dimension_numbers = #tpu.dot_dimension_numbers<[1], [0], [0], [1], [0, 0, 1, 1], [], []>} : vector<32x16xf32>, vector<16x8xf32>, vector<32x8xf32> -> vector<32x8xf32>
    %107 = vector.broadcast %14 : vector<1x8xf32> to vector<32x8xf32>
    %108 = arith.addf %106, %107 : vector<32x8xf32>
    %cst_47 = arith.constant dense<0.000000e+00> : vector<32x32xf32>
    %109 = tpu.matmul %91, %4, %cst_47 {dimension_numbers = #tpu.dot_dimension_numbers<[1], [0], [0], [1], [0, 0, 1, 1], [], []>} : vector<32x32xf32>, vector<32x32xf32>, vector<32x32xf32> -> vector<32x32xf32>
    %110 = vector.broadcast %9 : vector<1x32xf32> to vector<32x32xf32>
    %111 = arith.addf %109, %110 : vector<32x32xf32>
    %112 = arith.addf %111, %0 : vector<32x32xf32>
    %cst_48 = arith.constant dense<0.000000e+00> : vector<32xf32>
    %113 = vector.multi_reduction <add>, %112, %cst_48 [1] : vector<32x32xf32> to vector<32xf32>
    %114 = vector.shape_cast %113 : vector<32xf32> to vector<32x1xf32>
    %cst_49 = arith.constant 3.200000e+01 : f32
    %115 = vector.broadcast %cst_49 : f32 to vector<32x1xf32>
    %116 = arith.divf %114, %115 : vector<32x1xf32>
    %117 = vector.broadcast %116 : vector<32x1xf32> to vector<32x32xf32>
    %118 = arith.subf %112, %117 : vector<32x32xf32>
    %119 = arith.mulf %118, %118 : vector<32x32xf32>
    %cst_50 = arith.constant dense<0.000000e+00> : vector<32xf32>
    %120 = vector.multi_reduction <add>, %119, %cst_50 [1] : vector<32x32xf32> to vector<32xf32>
    %121 = vector.shape_cast %120 : vector<32xf32> to vector<32x1xf32>
    %cst_51 = arith.constant 3.200000e+01 : f32
    %122 = vector.broadcast %cst_51 : f32 to vector<32x1xf32>
    %123 = arith.divf %121, %122 : vector<32x1xf32>
    %124 = vector.broadcast %116 : vector<32x1xf32> to vector<32x32xf32>
    %125 = arith.subf %112, %124 : vector<32x32xf32>
    %cst_52 = arith.constant 9.99999974E-6 : f32
    %126 = vector.broadcast %cst_52 : f32 to vector<32x1xf32>
    %127 = arith.addf %123, %126 : vector<32x1xf32>
    %128 = math.rsqrt %127 : vector<32x1xf32>
    %129 = vector.broadcast %128 : vector<32x1xf32> to vector<32x32xf32>
    %130 = arith.mulf %125, %129 : vector<32x32xf32>
    %131 = vector.broadcast %10 : vector<1x32xf32> to vector<32x32xf32>
    %132 = arith.mulf %130, %131 : vector<32x32xf32>
    %133 = vector.broadcast %11 : vector<1x32xf32> to vector<32x32xf32>
    %134 = arith.addf %132, %133 : vector<32x32xf32>
    %135 = vector.extract_strided_slice %108 {offsets = [0, 0], sizes = [32, 2], strides = [1, 1]} : vector<32x8xf32> to vector<32x2xf32>
    %136 = vector.extract_strided_slice %108 {offsets = [0, 2], sizes = [32, 2], strides = [1, 1]} : vector<32x8xf32> to vector<32x2xf32>
    %137 = vector.extract_strided_slice %108 {offsets = [0, 4], sizes = [32, 2], strides = [1, 1]} : vector<32x8xf32> to vector<32x2xf32>
    %138 = vector.extract_strided_slice %108 {offsets = [0, 6], sizes = [32, 2], strides = [1, 1]} : vector<32x8xf32> to vector<32x2xf32>
    %139 = vector.extract_strided_slice %94 {offsets = [0, 0], sizes = [32, 2], strides = [1, 1]} : vector<32x8xf32> to vector<32x2xf32>
    %140 = vector.extract_strided_slice %94 {offsets = [0, 2], sizes = [32, 2], strides = [1, 1]} : vector<32x8xf32> to vector<32x2xf32>
    %141 = vector.extract_strided_slice %94 {offsets = [0, 4], sizes = [32, 2], strides = [1, 1]} : vector<32x8xf32> to vector<32x2xf32>
    %142 = vector.extract_strided_slice %94 {offsets = [0, 6], sizes = [32, 2], strides = [1, 1]} : vector<32x8xf32> to vector<32x2xf32>
    %143 = arith.maximumf %135, %136 : vector<32x2xf32>
    %144 = arith.maximumf %143, %137 : vector<32x2xf32>
    %145 = arith.maximumf %144, %138 : vector<32x2xf32>
    %146 = arith.subf %135, %145 : vector<32x2xf32>
    %147 = math.exp %146 : vector<32x2xf32>
    %148 = arith.subf %136, %145 : vector<32x2xf32>
    %149 = math.exp %148 : vector<32x2xf32>
    %150 = arith.subf %137, %145 : vector<32x2xf32>
    %151 = math.exp %150 : vector<32x2xf32>
    %152 = arith.subf %138, %145 : vector<32x2xf32>
    %153 = math.exp %152 : vector<32x2xf32>
    %154 = arith.addf %147, %149 : vector<32x2xf32>
    %155 = arith.addf %154, %151 : vector<32x2xf32>
    %156 = arith.addf %155, %153 : vector<32x2xf32>
    %157 = tpu.reciprocal %156 {approx = true} : vector<32x2xf32> -> vector<32x2xf32>
    %158 = arith.addf %2, %139 : vector<32x2xf32>
    %159 = arith.mulf %158, %147 : vector<32x2xf32>
    %160 = arith.addf %2, %140 : vector<32x2xf32>
    %161 = arith.mulf %160, %149 : vector<32x2xf32>
    %162 = arith.addf %159, %161 : vector<32x2xf32>
    %163 = arith.addf %2, %141 : vector<32x2xf32>
    %164 = arith.mulf %163, %151 : vector<32x2xf32>
    %165 = arith.addf %162, %164 : vector<32x2xf32>
    %166 = arith.addf %2, %142 : vector<32x2xf32>
    %167 = arith.mulf %166, %153 : vector<32x2xf32>
    %168 = arith.addf %165, %167 : vector<32x2xf32>
    %169 = arith.mulf %168, %157 : vector<32x2xf32>
    %cst_53 = arith.constant 0.000000e+00 : f32
    %170 = vector.broadcast %cst_53 : f32 to vector<32x94xf32>
    %171 = tpu.concatenate %134, %169, %170 in 1 : vector<32x32xf32>, vector<32x2xf32>, vector<32x94xf32> -> vector<32x128xf32>
    %c0_54 = arith.constant 0 : index
    %c0_55 = arith.constant 0 : index
    %172 = vector.load %arg3[%c0_54, %c0_55] : memref<32x128xf32, #tpu.memory_space<vmem>>, vector<32x128xf32>
    tpu.vector_store %arg3[%c0_54, %c0_55], %171 {strides = array<i32>} : memref<32x128xf32, #tpu.memory_space<vmem>>, vector<32x128xf32>,
    return
  }
  func.func @transform_0(%arg0: i32) -> (i32, i32) {
    %c0_i32 = arith.constant 0 : i32
    %c0_i32_0 = arith.constant 0 : i32
    %c0_i32_1 = arith.constant 0 : i32
    return %c0_i32, %c0_i32_0 : i32, i32
  }
  func.func @transform_1(%arg0: i32) -> (i32, i32) {
    %c0_i32 = arith.constant 0 : i32
    %c0_i32_0 = arith.constant 0 : i32
    %c0_i32_1 = arith.constant 0 : i32
    return %c0_i32, %c0_i32_0 : i32, i32
  }
  func.func @transform_2(%arg0: i32) -> (i32, i32) {
    %c0_i32 = arith.constant 0 : i32
    %c0_i32_0 = arith.constant 0 : i32
    %c0_i32_1 = arith.constant 0 : i32
    return %c0_i32, %c0_i32_0 : i32, i32
  }
}

</mosaic_0001>

<llo_original>
// kernel: tpu_custom_call.1
$region0: #{tpu_custom_call.1}
  #allocation0 [shape = 'u32[]', space=smem, size = 0x4, offset = 0x4, fixed_abs, tag = 'smem constant byte address 0x4 - core index']
  #allocation1 [shape = 'u32[144,128]{1,0:T(1,128)}', space=vmem, size = 0x12000, scoped, tag = 'internal scratch']
  %s0 = inlined_call_operand.hbm [shape: f32[32,128], index: 0, kind: input, shape index: {}]
  %s1 = inlined_call_operand.hbm [shape: f32[88,128], index: 1, kind: input, shape index: {}]
  %s2 = inlined_call_operand.hbm [shape: f32[32,128], index: 2, kind: output, shape index: {}]
  %s3 = sld [smem:[#allocation0]]
  $region26: #{tpu_custom_call.1} parent=0
    _
  %s5 = ssub.s32 1, %s3
  %s6 = scalar_select 0, %s5, %s3
  $region1: #{tpu_custom_call.1} parent=0
    #allocation2 [shape = 'u8[16384]{0}', space=vmem, size = 0x4000, scoped, tag = 'input window, operand 0, single buffered']
    #allocation3 [shape = 's32[1]{0}', space=sflag, size = 0x4, scoped, tag = 'scoped memory for tpu_custom_call.1']
    #allocation4 [shape = 's32[1]{0}', space=sflag, size = 0x4, scoped, tag = 'scoped memory for tpu_custom_call.1']
    #allocation5 [shape = 'u8[45056]{0}', space=vmem, size = 0xb000, scoped, tag = 'input window, operand 1, single buffered']
    #allocation6 [shape = 's32[1]{0}', space=sflag, size = 0x4, scoped, tag = 'scoped memory for tpu_custom_call.1']
    #allocation7 [shape = 'u8[16384]{0}', space=vmem, size = 0x4000, scoped, tag = 'output window, operand 0, single buffered']
    %7 = vsyncpa [#allocation3], 0
    %8 = vsyncpa [#allocation6], 0
    %9 = vsyncpa [#allocation4], 0
    // Predicated region
    $region2: #{tpu_custom_call.1} parent=1 // pred_check
      _
    $region3: #{tpu_custom_call.1} parent=1 // pred_check_branch
      %11 = sbr.rel (0) target = $region5
    $region4: #{tpu_custom_call.1} parent=1 // pred_region
      %s13 = ssub.s32 512, 512
      %14 = vsyncadd [#allocation3], %s13
      %s15 = sshll.u32 [#allocation2], 4
      %s16 = int_to_ptr.vmem [resolvable:$true] %s15
      %21 = dma.hbm_to_vmem [thread:$0]  %s0, 512, %s16, [#allocation3], 128, 128, 8
    $region5: #{tpu_custom_call.1} parent=1 // pred_fallthru
      _
    // Predicated region
    $region6: #{tpu_custom_call.1} parent=1 // pred_check
      _
    $region7: #{tpu_custom_call.1} parent=1 // pred_check_branch
      %23 = sbr.rel (0) target = $region9
    $region8: #{tpu_custom_call.1} parent=1 // pred_region
      %s25 = ssub.s32 1408, 1408
      %26 = vsyncadd [#allocation6], %s25
      %s27 = sshll.u32 [#allocation5], 4
      %s28 = int_to_ptr.vmem [resolvable:$true] %s27
      %33 = dma.hbm_to_vmem [thread:$0]  %s1, 1408, %s28, [#allocation6], 128, 128, 8
    $region9: #{tpu_custom_call.1} parent=1 // pred_fallthru
      _
    // Predicated region
    $region10: #{tpu_custom_call.1} parent=1 // pred_check
      _
    $region11: #{tpu_custom_call.1} parent=1 // pred_check_branch
      %35 = sbr.rel (0) target = $region13
    $region12: #{tpu_custom_call.1} parent=1 // pred_region
      %36 = dma.done [#allocation3], 512
    $region13: #{tpu_custom_call.1} parent=1 // pred_fallthru
      _
    // Predicated region
    $region14: #{tpu_custom_call.1} parent=1 // pred_check
      _
    $region15: #{tpu_custom_call.1} parent=1 // pred_check_branch
      %38 = sbr.rel (0) target = $region17
    $region16: #{tpu_custom_call.1} parent=1 // pred_region
      %39 = dma.done [#allocation6], 1408
    $region17: #{tpu_custom_call.1} parent=1 // pred_fallthru
      _
    %v40 = vld [vmem:[#allocation2] sm:$0xff]
    %v41 = vld [vmem:[#allocation2 + $0x8] sm:$0xff]
    %v42 = vld [vmem:[#allocation2 + $0x10] sm:$0xff]
    %v43 = vld [vmem:[#allocation2 + $0x18] sm:$0xff]
    %v44 = vld [vmem:[#allocation5] sm:$0xff]
    %v45 = vld [vmem:[#allocation5 + $0x8] sm:$0xff]
    %v46 = vld [vmem:[#allocation5 + $0x10] sm:$0xff]
    %v47 = vld [vmem:[#allocation5 + $0x18] sm:$0xff]
    %v48 = vld [vmem:[#allocation5 + $0x20] sm:$0xff]
    %v49 = vld [vmem:[#allocation5 + $0x28] sm:$0xff]
    %v50 = vld [vmem:[#allocation5 + $0x30] sm:$0xff]
    %v51 = vld [vmem:[#allocation5 + $0x38] sm:$0xff]
    %v52 = vld [vmem:[#allocation5 + $0x40] sm:$0x1]
    %v53 = vld [vmem:[#allocation5 + $0x48] sm:$0x1]
    %v54 = vld [vmem:[#allocation5 + $0x50] sm:$0x1]
    %v55 = vlaneseq
    %v56 = vshrl.u32 %v55, 7
    %v57 = vsub.s32 0, %v56
    %v58 = vrot.slane %v52, %v57
    %vm59 = vcmask 261120
    %v61 = vsel %vm59, %v40, 0
    %v64 = vsel %vm59, %v41, 0
    %v67 = vsel %vm59, %v42, 0
    %v70 = vsel %vm59, %v43, 0
    %72 = vmatprep.subr.mxu0 0.0
    %73 = vmatpush1.msra.mxu0 %v44
    %74 = vmatprep.subr.mxu0 0.0
    %75 = vmatpush1.msra.mxu0 %v45
    %76 = vmatprep.subr.mxu0 0.0
    %77 = vmatpush1.msra.mxu0 %v46
    %78 = vmatprep.subr.mxu0 0.0
    %79 = vmatpush1.msra.mxu0 %v47
    %80 = vmatprep.subr.mxu0 0.0
    %81 = vmatpush1.msra.mxu0 0.0
    %82 = vmatprep.subr.mxu0 0.0
    %83 = vmatpush1.msra.mxu0 0.0
    %84 = vmatprep.subr.mxu0 0.0
    %85 = vmatpush1.msra.mxu0 0.0
    %86 = vmatprep.subr.mxu0 0.0
    %87 = vmatpush1.msra.mxu0 0.0
    %88 = vmatprep.subr.mxu0 0.0
    %89 = vmatpush1.msra.mxu0 0.0
    %90 = vmatprep.subr.mxu0 0.0
    %91 = vmatpush1.msra.mxu0 0.0
    %92 = vmatprep.subr.mxu0 0.0
    %93 = vmatpush1.msra.mxu0 0.0
    %94 = vmatprep.subr.mxu0 0.0
    %95 = vmatpush1.msra.mxu0 0.0
    %96 = vmatprep.subr.mxu0 0.0
    %97 = vmatpush1.msra.mxu0 0.0
    %98 = vmatprep.subr.mxu0 0.0
    %99 = vmatpush1.msra.mxu0 0.0
    %100 = vmatprep.subr.mxu0 0.0
    %101 = vmatpush1.msra.mxu0 0.0
    %102 = vmatprep.subr.mxu0 0.0
    %103 = vmatpush1.msra.mxu0 0.0
    %104 = vmatprep.subr.mxu0 0.0
    %105 = vmatpush1.msra.mxu0 0.0
    %106 = vmatprep.subr.mxu0 0.0
    %107 = vmatpush1.msra.mxu0 0.0
    %108 = vmatprep.subr.mxu0 0.0
    %109 = vmatpush1.msra.mxu0 0.0
    %110 = vmatprep.subr.mxu0 0.0
    %111 = vmatpush1.msra.mxu0 0.0
    %112 = vmatprep.subr.mxu0 0.0
    %113 = vmatpush1.msra.mxu0 0.0
    %114 = vmatprep.subr.mxu0 0.0
    %115 = vmatpush1.msra.mxu0 0.0
    %116 = vmatprep.subr.mxu0 0.0
    %117 = vmatpush1.msra.mxu0 0.0
    %118 = vmatprep.subr.mxu0 0.0
    %119 = vmatpush1.msra.mxu0 0.0
    %120 = vmatprep.subr.mxu0 0.0
    %121 = vmatpush1.msra.mxu0 0.0
    %122 = vmatprep.subr.mxu0 0.0
    %123 = vmatpush1.msra.mxu0 0.0
    %124 = vmatprep.subr.mxu0 0.0
    %125 = vmatpush1.msra.mxu0 0.0
    %126 = vmatprep.subr.mxu0 0.0
    %127 = vmatpush1.msra.mxu0 0.0
    %128 = vmatprep.subr.mxu0 0.0
    %129 = vmatpush1.msra.mxu0 0.0
    %130 = vmatprep.subr.mxu0 0.0
    %131 = vmatpush1.msra.mxu0 0.0
    %132 = vmatprep.subr.mxu0 0.0
    %133 = vmatpush1.msra.mxu0 0.0
    %134 = vmatprep.subr.mxu0 0.0
    %135 = vmatpush1.msra.mxu0 0.0
    %136 = vmatprep.mubr.f32.mxu0 0.0
    %137 = vmatmul.mubr.f32.gmra.mrb[0].mxu0 %v61
    %v138 = vpop.f32.mrb[0].mxu0
    %v139 = vadd.f32 %v58, %v138
    %v140 = vpop.f32.mrb[0].mxu0
    %141 = vmatprep.mubr.f32.mxu0 0.0
    %142 = vmatmul.mubr.f32.gmra.mrb[0].mxu0 %v64
    %v143 = vpop.f32.mrb[0].mxu0
    %v144 = vadd.f32 %v58, %v143
    %v145 = vpop.f32.mrb[0].mxu0
    %146 = vmatprep.mubr.f32.mxu0 0.0
    %147 = vmatmul.mubr.f32.gmra.mrb[0].mxu0 %v67
    %v148 = vpop.f32.mrb[0].mxu0
    %v149 = vadd.f32 %v58, %v148
    %v150 = vpop.f32.mrb[0].mxu0
    %151 = vmatprep.mubr.f32.mxu0 0.0
    %152 = vmatmul.mubr.f32.gmra.mrb[0].mxu0 %v70
    %v153 = vpop.f32.mrb[0].mxu0
    %v154 = vadd.f32 %v58, %v153
    %v155 = vpop.f32.mrb[0].mxu0
    %156 = vdwg.mxu0
    %161 = vrot.lane.b32.xlu0 %v139, 96
    %v162 = vpop.permute.xlu0 %161
    %163 = vrot.lane.b32.xlu0 %v144, 96
    %v164 = vpop.permute.xlu0 %163
    %165 = vrot.lane.b32.xlu0 %v149, 96
    %v166 = vpop.permute.xlu0 %165
    %167 = vrot.lane.b32.xlu0 %v154, 96
    %v168 = vpop.permute.xlu0 %167
    %vm169 = vcmask 64512
    %v170 = vsel %vm169, %v139, 0
    %v172 = vsel %vm169, %v144, 0
    %v174 = vsel %vm169, %v149, 0
    %v176 = vsel %vm169, %v154, 0
    %v178 = vsel %vm169, %v162, 0
    %v180 = vsel %vm169, %v164, 0
    %v182 = vsel %vm169, %v166, 0
    %v184 = vsel %vm169, %v168, 0
    %186 = vmatprep.subr.mxu0 0.0
    %187 = vmatpush1.xpose.msra.mxu0 %v178
    %188 = vmatprep.subr.mxu0 0.0
    %189 = vmatpush1.xpose.msra.mxu0 %v180
    %190 = vmatprep.subr.mxu0 0.0
    %191 = vmatpush1.xpose.msra.mxu0 %v182
    %192 = vmatprep.subr.mxu0 0.0
    %193 = vmatpush1.xpose.msra.mxu0 %v184
    %194 = vmatprep.subr.mxu0 0.0
    %195 = vmatpush1.xpose.msra.mxu0 0.0
    %196 = vmatprep.subr.mxu0 0.0
    %197 = vmatpush1.xpose.msra.mxu0 0.0
    %198 = vmatprep.subr.mxu0 0.0
    %199 = vmatpush1.xpose.msra.mxu0 0.0
    %200 = vmatprep.subr.mxu0 0.0
    %201 = vmatpush1.xpose.msra.mxu0 0.0
    %202 = vmatprep.subr.mxu0 0.0
    %203 = vmatpush1.xpose.msra.mxu0 0.0
    %204 = vmatprep.subr.mxu0 0.0
    %205 = vmatpush1.xpose.msra.mxu0 0.0
    %206 = vmatprep.subr.mxu0 0.0
    %207 = vmatpush1.xpose.msra.mxu0 0.0
    %208 = vmatprep.subr.mxu0 0.0
    %209 = vmatpush1.xpose.msra.mxu0 0.0
    %210 = vmatprep.subr.mxu0 0.0
    %211 = vmatpush1.xpose.msra.mxu0 0.0
    %212 = vmatprep.subr.mxu0 0.0
    %213 = vmatpush1.xpose.msra.mxu0 0.0
    %214 = vmatprep.subr.mxu0 0.0
    %215 = vmatpush1.xpose.msra.mxu0 0.0
    %216 = vmatprep.subr.mxu0 0.0
    %217 = vmatpush1.xpose.msra.mxu0 0.0
    %218 = vmatprep.subr.mxu0 0.0
    %219 = vmatpush1.xpose.msra.mxu0 0.0
    %220 = vmatprep.subr.mxu0 0.0
    %221 = vmatpush1.xpose.msra.mxu0 0.0
    %222 = vmatprep.subr.mxu0 0.0
    %223 = vmatpush1.xpose.msra.mxu0 0.0
    %224 = vmatprep.subr.mxu0 0.0
    %225 = vmatpush1.xpose.msra.mxu0 0.0
    %226 = vmatprep.subr.mxu0 0.0
    %227 = vmatpush1.xpose.msra.mxu0 0.0
    %228 = vmatprep.subr.mxu0 0.0
    %229 = vmatpush1.xpose.msra.mxu0 0.0
    %230 = vmatprep.subr.mxu0 0.0
    %231 = vmatpush1.xpose.msra.mxu0 0.0
    %232 = vmatprep.subr.mxu0 0.0
    %233 = vmatpush1.xpose.msra.mxu0 0.0
    %234 = vmatprep.subr.mxu0 0.0
    %235 = vmatpush1.xpose.msra.mxu0 0.0
    %236 = vmatprep.subr.mxu0 0.0
    %237 = vmatpush1.xpose.msra.mxu0 0.0
    %238 = vmatprep.subr.mxu0 0.0
    %239 = vmatpush1.xpose.msra.mxu0 0.0
    %240 = vmatprep.subr.mxu0 0.0
    %241 = vmatpush1.xpose.msra.mxu0 0.0
    %242 = vmatprep.subr.mxu0 0.0
    %243 = vmatpush1.xpose.msra.mxu0 0.0
    %244 = vmatprep.subr.mxu0 0.0
    %245 = vmatpush1.xpose.msra.mxu0 0.0
    %246 = vmatprep.subr.mxu0 0.0
    %247 = vmatpush1.xpose.msra.mxu0 0.0
    %248 = vmatprep.subr.mxu0 0.0
    %249 = vmatpush1.xpose.msra.mxu0 0.0
    %250 = vmatprep.mubr.f32.mxu0 0.0
    %251 = vmatmul.mubr.f32.gmra.mrb[0].mxu0 %v170
    %v252 = vpop.f32.mrb[0].mxu0
    %v253 = vadd.f32 0.0, %v252
    %v254 = vpop.f32.mrb[0].mxu0
    %255 = vmatprep.mubr.f32.mxu0 0.0
    %256 = vmatmul.mubr.f32.gmra.mrb[0].mxu0 %v172
    %v257 = vpop.f32.mrb[0].mxu0
    %v258 = vadd.f32 0.0, %v257
    %v259 = vpop.f32.mrb[0].mxu0
    %260 = vmatprep.mubr.f32.mxu0 0.0
    %261 = vmatmul.mubr.f32.gmra.mrb[0].mxu0 %v174
    %v262 = vpop.f32.mrb[0].mxu0
    %v263 = vadd.f32 0.0, %v262
    %v264 = vpop.f32.mrb[0].mxu0
    %265 = vmatprep.mubr.f32.mxu0 0.0
    %266 = vmatmul.mubr.f32.gmra.mrb[0].mxu0 %v176
    %v267 = vpop.f32.mrb[0].mxu0
    %v268 = vadd.f32 0.0, %v267
    %v269 = vpop.f32.mrb[0].mxu0
    %270 = vdwg.mxu0
    %v271 = vmul.f32 %v253, 0.35355338
    %v272 = vmul.f32 %v258, 0.35355338
    %v273 = vmul.f32 %v263, 0.35355338
    %v274 = vmul.f32 %v268, 0.35355338
    %275 = vrot.lane.b32.xlu0 %v40, 96
    %v276 = vpop.permute.xlu0 %275
    %277 = vrot.lane.b32.xlu0 %v41, 96
    %v278 = vpop.permute.xlu0 %277
    %279 = vrot.lane.b32.xlu0 %v42, 96
    %v280 = vpop.permute.xlu0 %279
    %281 = vrot.lane.b32.xlu0 %v43, 96
    %v282 = vpop.permute.xlu0 %281
    %v287 = vadd.f32 %v271, %v276
    %v288 = vadd.f32 %v272, %v278
    %v289 = vadd.f32 %v273, %v280
    %v290 = vadd.f32 %v274, %v282
    %v291 = vsel %vm59, %v287, -inf
    %292 = vmax.xlane.f32.xlu0 %v291
    %v293 = vpop.xlane.xlu0 %292
    %v294 = vsel %vm59, %v288, -inf
    %295 = vmax.xlane.f32.xlu0 %v294
    %v296 = vpop.xlane.xlu0 %295
    %v297 = vsel %vm59, %v289, -inf
    %298 = vmax.xlane.f32.xlu0 %v297
    %v299 = vpop.xlane.xlu0 %298
    %v300 = vsel %vm59, %v290, -inf
    %301 = vmax.xlane.f32.xlu0 %v300
    %v302 = vpop.xlane.xlu0 %301
    %v303 = vsub.f32 %v287, %v293
    %v304 = vsub.f32 %v288, %v296
    %v305 = vsub.f32 %v289, %v299
    %v306 = vsub.f32 %v290, %v302
    %v307 = vmul.f32 %v303, 1.442695
    %v308 = vpow.pop %v307
    %v309 = vmul.f32 %v304, 1.442695
    %v310 = vpow.pop %v309
    %v311 = vmul.f32 %v305, 1.442695
    %v312 = vpow.pop %v311
    %v313 = vmul.f32 %v306, 1.442695
    %v314 = vpow.pop %v313
    %315 = vrot.lane.b32.xlu0 %v139, 64
    %v316 = vpop.permute.xlu0 %315
    %317 = vrot.lane.b32.xlu0 %v144, 64
    %v318 = vpop.permute.xlu0 %317
    %319 = vrot.lane.b32.xlu0 %v149, 64
    %v320 = vpop.permute.xlu0 %319
    %321 = vrot.lane.b32.xlu0 %v154, 64
    %v322 = vpop.permute.xlu0 %321
    %v328 = vsel %vm59, %v308, 0
    %v331 = vsel %vm59, %v310, 0
    %v334 = vsel %vm59, %v312, 0
    %v337 = vsel %vm59, %v314, 0
    %339 = vmatprep.subr.mxu0 0.0
    %340 = vmatpush1.msra.mxu0 %v316
    %341 = vmatprep.subr.mxu0 0.0
    %342 = vmatpush1.msra.mxu0 %v318
    %343 = vmatprep.subr.mxu0 0.0
    %344 = vmatpush1.msra.mxu0 %v320
    %345 = vmatprep.subr.mxu0 0.0
    %346 = vmatpush1.msra.mxu0 %v322
    %347 = vmatprep.subr.mxu0 0.0
    %348 = vmatpush1.msra.mxu0 0.0
    %349 = vmatprep.subr.mxu0 0.0
    %350 = vmatpush1.msra.mxu0 0.0
    %351 = vmatprep.subr.mxu0 0.0
    %352 = vmatpush1.msra.mxu0 0.0
    %353 = vmatprep.subr.mxu0 0.0
    %354 = vmatpush1.msra.mxu0 0.0
    %355 = vmatprep.subr.mxu0 0.0
    %356 = vmatpush1.msra.mxu0 0.0
    %357 = vmatprep.subr.mxu0 0.0
    %358 = vmatpush1.msra.mxu0 0.0
    %359 = vmatprep.subr.mxu0 0.0
    %360 = vmatpush1.msra.mxu0 0.0
    %361 = vmatprep.subr.mxu0 0.0
    %362 = vmatpush1.msra.mxu0 0.0
    %363 = vmatprep.subr.mxu0 0.0
    %364 = vmatpush1.msra.mxu0 0.0
    %365 = vmatprep.subr.mxu0 0.0
    %366 = vmatpush1.msra.mxu0 0.0
    %367 = vmatprep.subr.mxu0 0.0
    %368 = vmatpush1.msra.mxu0 0.0
    %369 = vmatprep.subr.mxu0 0.0
    %370 = vmatpush1.msra.mxu0 0.0
    %371 = vmatprep.subr.mxu0 0.0
    %372 = vmatpush1.msra.mxu0 0.0
    %373 = vmatprep.subr.mxu0 0.0
    %374 = vmatpush1.msra.mxu0 0.0
    %375 = vmatprep.subr.mxu0 0.0
    %376 = vmatpush1.msra.mxu0 0.0
    %377 = vmatprep.subr.mxu0 0.0
    %378 = vmatpush1.msra.mxu0 0.0
    %379 = vmatprep.subr.mxu0 0.0
    %380 = vmatpush1.msra.mxu0 0.0
    %381 = vmatprep.subr.mxu0 0.0
    %382 = vmatpush1.msra.mxu0 0.0
    %383 = vmatprep.subr.mxu0 0.0
    %384 = vmatpush1.msra.mxu0 0.0
    %385 = vmatprep.subr.mxu0 0.0
    %386 = vmatpush1.msra.mxu0 0.0
    %387 = vmatprep.subr.mxu0 0.0
    %388 = vmatpush1.msra.mxu0 0.0
    %389 = vmatprep.subr.mxu0 0.0
    %390 = vmatpush1.msra.mxu0 0.0
    %391 = vmatprep.subr.mxu0 0.0
    %392 = vmatpush1.msra.mxu0 0.0
    %393 = vmatprep.subr.mxu0 0.0
    %394 = vmatpush1.msra.mxu0 0.0
    %395 = vmatprep.subr.mxu0 0.0
    %396 = vmatpush1.msra.mxu0 0.0
    %397 = vmatprep.subr.mxu0 0.0
    %398 = vmatpush1.msra.mxu0 0.0
    %399 = vmatprep.subr.mxu0 0.0
    %400 = vmatpush1.msra.mxu0 0.0
    %401 = vmatprep.subr.mxu0 0.0
    %402 = vmatpush1.msra.mxu0 0.0
    %403 = vmatprep.mubr.f32.mxu0 0.0
    %404 = vmatmul.mubr.f32.gmra.mrb[0].mxu0 %v328
    %v405 = vpop.f32.mrb[0].mxu0
    %v406 = vadd.f32 0.0, %v405
    %v407 = vpop.f32.mrb[0].mxu0
    %408 = vmatprep.mubr.f32.mxu0 0.0
    %409 = vmatmul.mubr.f32.gmra.mrb[0].mxu0 %v331
    %v410 = vpop.f32.mrb[0].mxu0
    %v411 = vadd.f32 0.0, %v410
    %v412 = vpop.f32.mrb[0].mxu0
    %413 = vmatprep.mubr.f32.mxu0 0.0
    %414 = vmatmul.mubr.f32.gmra.mrb[0].mxu0 %v334
    %v415 = vpop.f32.mrb[0].mxu0
    %v416 = vadd.f32 0.0, %v415
    %v417 = vpop.f32.mrb[0].mxu0
    %418 = vmatprep.mubr.f32.mxu0 0.0
    %419 = vmatmul.mubr.f32.gmra.mrb[0].mxu0 %v337
    %v420 = vpop.f32.mrb[0].mxu0
    %v421 = vadd.f32 0.0, %v420
    %v422 = vpop.f32.mrb[0].mxu0
    %423 = vdwg.mxu0
    %v424 = vsel %vm59, %v308, 0.0
    %425 = vadd.xlane.f32.xlu0 %v424
    %v426 = vpop.xlane.xlu0 %425
    %v427 = vsel %vm59, %v310, 0.0
    %428 = vadd.xlane.f32.xlu0 %v427
    %v429 = vpop.xlane.xlu0 %428
    %v430 = vsel %vm59, %v312, 0.0
    %431 = vadd.xlane.f32.xlu0 %v430
    %v432 = vpop.xlane.xlu0 %431
    %v433 = vsel %vm59, %v314, 0.0
    %434 = vadd.xlane.f32.xlu0 %v433
    %v435 = vpop.xlane.xlu0 %434
    %v436 = vrcp.pop %v426
    %v437 = vrcp.pop %v429
    %v438 = vrcp.pop %v432
    %v439 = vrcp.pop %v435
    %v440 = vmul.f32 %v406, %v436
    %v441 = vmul.f32 %v411, %v437
    %v442 = vmul.f32 %v416, %v438
    %v443 = vmul.f32 %v421, %v439
    %444 = vrot.lane.b32.xlu0 %v139, 120
    %v445 = vpop.permute.xlu0 %444
    %446 = vrot.lane.b32.xlu0 %v144, 120
    %v447 = vpop.permute.xlu0 %446
    %448 = vrot.lane.b32.xlu0 %v149, 120
    %v449 = vpop.permute.xlu0 %448
    %450 = vrot.lane.b32.xlu0 %v154, 120
    %v451 = vpop.permute.xlu0 %450
    %452 = vrot.lane.b32.xlu0 %v139, 88
    %v453 = vpop.permute.xlu0 %452
    %454 = vrot.lane.b32.xlu0 %v144, 88
    %v455 = vpop.permute.xlu0 %454
    %456 = vrot.lane.b32.xlu0 %v149, 88
    %v457 = vpop.permute.xlu0 %456
    %458 = vrot.lane.b32.xlu0 %v154, 88
    %v459 = vpop.permute.xlu0 %458
    %v460 = vsel %vm169, %v445, 0
    %v462 = vsel %vm169, %v447, 0
    %v464 = vsel %vm169, %v449, 0
    %v466 = vsel %vm169, %v451, 0
    %v468 = vsel %vm169, %v453, 0
    %v470 = vsel %vm169, %v455, 0
    %v472 = vsel %vm169, %v457, 0
    %v474 = vsel %vm169, %v459, 0
    %476 = vmatprep.subr.mxu0 0.0
    %477 = vmatpush1.xpose.msra.mxu0 %v468
    %478 = vmatprep.subr.mxu0 0.0
    %479 = vmatpush1.xpose.msra.mxu0 %v470
    %480 = vmatprep.subr.mxu0 0.0
    %481 = vmatpush1.xpose.msra.mxu0 %v472
    %482 = vmatprep.subr.mxu0 0.0
    %483 = vmatpush1.xpose.msra.mxu0 %v474
    %484 = vmatprep.subr.mxu0 0.0
    %485 = vmatpush1.xpose.msra.mxu0 0.0
    %486 = vmatprep.subr.mxu0 0.0
    %487 = vmatpush1.xpose.msra.mxu0 0.0
    %488 = vmatprep.subr.mxu0 0.0
    %489 = vmatpush1.xpose.msra.mxu0 0.0
    %490 = vmatprep.subr.mxu0 0.0
    %491 = vmatpush1.xpose.msra.mxu0 0.0
    %492 = vmatprep.subr.mxu0 0.0
    %493 = vmatpush1.xpose.msra.mxu0 0.0
    %494 = vmatprep.subr.mxu0 0.0
    %495 = vmatpush1.xpose.msra.mxu0 0.0
    %496 = vmatprep.subr.mxu0 0.0
    %497 = vmatpush1.xpose.msra.mxu0 0.0
    %498 = vmatprep.subr.mxu0 0.0
    %499 = vmatpush1.xpose.msra.mxu0 0.0
    %500 = vmatprep.subr.mxu0 0.0
    %501 = vmatpush1.xpose.msra.mxu0 0.0
    %502 = vmatprep.subr.mxu0 0.0
    %503 = vmatpush1.xpose.msra.mxu0 0.0
    %504 = vmatprep.subr.mxu0 0.0
    %505 = vmatpush1.xpose.msra.mxu0 0.0
    %506 = vmatprep.subr.mxu0 0.0
    %507 = vmatpush1.xpose.msra.mxu0 0.0
    %508 = vmatprep.subr.mxu0 0.0
    %509 = vmatpush1.xpose.msra.mxu0 0.0
    %510 = vmatprep.subr.mxu0 0.0
    %511 = vmatpush1.xpose.msra.mxu0 0.0
    %512 = vmatprep.subr.mxu0 0.0
    %513 = vmatpush1.xpose.msra.mxu0 0.0
    %514 = vmatprep.subr.mxu0 0.0
    %515 = vmatpush1.xpose.msra.mxu0 0.0
    %516 = vmatprep.subr.mxu0 0.0
    %517 = vmatpush1.xpose.msra.mxu0 0.0
    %518 = vmatprep.subr.mxu0 0.0
    %519 = vmatpush1.xpose.msra.mxu0 0.0
    %520 = vmatprep.subr.mxu0 0.0
    %521 = vmatpush1.xpose.msra.mxu0 0.0
    %522 = vmatprep.subr.mxu0 0.0
    %523 = vmatpush1.xpose.msra.mxu0 0.0
    %524 = vmatprep.subr.mxu0 0.0
    %525 = vmatpush1.xpose.msra.mxu0 0.0
    %526 = vmatprep.subr.mxu0 0.0
    %527 = vmatpush1.xpose.msra.mxu0 0.0
    %528 = vmatprep.subr.mxu0 0.0
    %529 = vmatpush1.xpose.msra.mxu0 0.0
    %530 = vmatprep.subr.mxu0 0.0
    %531 = vmatpush1.xpose.msra.mxu0 0.0
    %532 = vmatprep.subr.mxu0 0.0
    %533 = vmatpush1.xpose.msra.mxu0 0.0
    %534 = vmatprep.subr.mxu0 0.0
    %535 = vmatpush1.xpose.msra.mxu0 0.0
    %536 = vmatprep.subr.mxu0 0.0
    %537 = vmatpush1.xpose.msra.mxu0 0.0
    %538 = vmatprep.subr.mxu0 0.0
    %539 = vmatpush1.xpose.msra.mxu0 0.0
    %540 = vmatprep.mubr.f32.mxu0 0.0
    %541 = vmatmul.mubr.f32.gmra.mrb[0].mxu0 %v460
    %v542 = vpop.f32.mrb[0].mxu0
    %v543 = vadd.f32 0.0, %v542
    %v544 = vpop.f32.mrb[0].mxu0
    %545 = vmatprep.mubr.f32.mxu0 0.0
    %546 = vmatmul.mubr.f32.gmra.mrb[0].mxu0 %v462
    %v547 = vpop.f32.mrb[0].mxu0
    %v548 = vadd.f32 0.0, %v547
    %v549 = vpop.f32.mrb[0].mxu0
    %550 = vmatprep.mubr.f32.mxu0 0.0
    %551 = vmatmul.mubr.f32.gmra.mrb[0].mxu0 %v464
    %v552 = vpop.f32.mrb[0].mxu0
    %v553 = vadd.f32 0.0, %v552
    %v554 = vpop.f32.mrb[0].mxu0
    %555 = vmatprep.mubr.f32.mxu0 0.0
    %556 = vmatmul.mubr.f32.gmra.mrb[0].mxu0 %v466
    %v557 = vpop.f32.mrb[0].mxu0
    %v558 = vadd.f32 0.0, %v557
    %v559 = vpop.f32.mrb[0].mxu0
    %560 = vdwg.mxu0
    %v561 = vmul.f32 %v543, 0.35355338
    %v562 = vmul.f32 %v548, 0.35355338
    %v563 = vmul.f32 %v553, 0.35355338
    %v564 = vmul.f32 %v558, 0.35355338
    %v565 = vadd.f32 %v561, %v276
    %v566 = vadd.f32 %v562, %v278
    %v567 = vadd.f32 %v563, %v280
    %v568 = vadd.f32 %v564, %v282
    %v569 = vsel %vm59, %v565, -inf
    %570 = vmax.xlane.f32.xlu0 %v569
    %v571 = vpop.xlane.xlu0 %570
    %v572 = vsel %vm59, %v566, -inf
    %573 = vmax.xlane.f32.xlu0 %v572
    %v574 = vpop.xlane.xlu0 %573
    %v575 = vsel %vm59, %v567, -inf
    %576 = vmax.xlane.f32.xlu0 %v575
    %v577 = vpop.xlane.xlu0 %576
    %v578 = vsel %vm59, %v568, -inf
    %579 = vmax.xlane.f32.xlu0 %v578
    %v580 = vpop.xlane.xlu0 %579
    %v581 = vsub.f32 %v565, %v571
    %v582 = vsub.f32 %v566, %v574
    %v583 = vsub.f32 %v567, %v577
    %v584 = vsub.f32 %v568, %v580
    %v585 = vmul.f32 %v581, 1.442695
    %v586 = vpow.pop %v585
    %v587 = vmul.f32 %v582, 1.442695
    %v588 = vpow.pop %v587
    %v589 = vmul.f32 %v583, 1.442695
    %v590 = vpow.pop %v589
    %v591 = vmul.f32 %v584, 1.442695
    %v592 = vpow.pop %v591
    %593 = vrot.lane.b32.xlu0 %v139, 56
    %v594 = vpop.permute.xlu0 %593
    %595 = vrot.lane.b32.xlu0 %v144, 56
    %v596 = vpop.permute.xlu0 %595
    %597 = vrot.lane.b32.xlu0 %v149, 56
    %v598 = vpop.permute.xlu0 %597
    %599 = vrot.lane.b32.xlu0 %v154, 56
    %v600 = vpop.permute.xlu0 %599
    %v606 = vsel %vm59, %v586, 0
    %v609 = vsel %vm59, %v588, 0
    %v612 = vsel %vm59, %v590, 0
    %v615 = vsel %vm59, %v592, 0
    %617 = vmatprep.subr.mxu0 0.0
    %618 = vmatpush1.msra.mxu0 %v594
    %619 = vmatprep.subr.mxu0 0.0
    %620 = vmatpush1.msra.mxu0 %v596
    %621 = vmatprep.subr.mxu0 0.0
    %622 = vmatpush1.msra.mxu0 %v598
    %623 = vmatprep.subr.mxu0 0.0
    %624 = vmatpush1.msra.mxu0 %v600
    %625 = vmatprep.subr.mxu0 0.0
    %626 = vmatpush1.msra.mxu0 0.0
    %627 = vmatprep.subr.mxu0 0.0
    %628 = vmatpush1.msra.mxu0 0.0
    %629 = vmatprep.subr.mxu0 0.0
    %630 = vmatpush1.msra.mxu0 0.0
    %631 = vmatprep.subr.mxu0 0.0
    %632 = vmatpush1.msra.mxu0 0.0
    %633 = vmatprep.subr.mxu0 0.0
    %634 = vmatpush1.msra.mxu0 0.0
    %635 = vmatprep.subr.mxu0 0.0
    %636 = vmatpush1.msra.mxu0 0.0
    %637 = vmatprep.subr.mxu0 0.0
    %638 = vmatpush1.msra.mxu0 0.0
    %639 = vmatprep.subr.mxu0 0.0
    %640 = vmatpush1.msra.mxu0 0.0
    %641 = vmatprep.subr.mxu0 0.0
    %642 = vmatpush1.msra.mxu0 0.0
    %643 = vmatprep.subr.mxu0 0.0
    %644 = vmatpush1.msra.mxu0 0.0
    %645 = vmatprep.subr.mxu0 0.0
    %646 = vmatpush1.msra.mxu0 0.0
    %647 = vmatprep.subr.mxu0 0.0
    %648 = vmatpush1.msra.mxu0 0.0
    %649 = vmatprep.subr.mxu0 0.0
    %650 = vmatpush1.msra.mxu0 0.0
    %651 = vmatprep.subr.mxu0 0.0
    %652 = vmatpush1.msra.mxu0 0.0
    %653 = vmatprep.subr.mxu0 0.0
    %654 = vmatpush1.msra.mxu0 0.0
    %655 = vmatprep.subr.mxu0 0.0
    %656 = vmatpush1.msra.mxu0 0.0
    %657 = vmatprep.subr.mxu0 0.0
    %658 = vmatpush1.msra.mxu0 0.0
    %659 = vmatprep.subr.mxu0 0.0
    %660 = vmatpush1.msra.mxu0 0.0
    %661 = vmatprep.subr.mxu0 0.0
    %662 = vmatpush1.msra.mxu0 0.0
    %663 = vmatprep.subr.mxu0 0.0
    %664 = vmatpush1.msra.mxu0 0.0
    %665 = vmatprep.subr.mxu0 0.0
    %666 = vmatpush1.msra.mxu0 0.0
    %667 = vmatprep.subr.mxu0 0.0
    %668 = vmatpush1.msra.mxu0 0.0
    %669 = vmatprep.subr.mxu0 0.0
    %670 = vmatpush1.msra.mxu0 0.0
    %671 = vmatprep.subr.mxu0 0.0
    %672 = vmatpush1.msra.mxu0 0.0
    %673 = vmatprep.subr.mxu0 0.0
    %674 = vmatpush1.msra.mxu0 0.0
    %675 = vmatprep.subr.mxu0 0.0
    %676 = vmatpush1.msra.mxu0 0.0
    %677 = vmatprep.subr.mxu0 0.0
    %678 = vmatpush1.msra.mxu0 0.0
    %679 = vmatprep.subr.mxu0 0.0
    %680 = vmatpush1.msra.mxu0 0.0
    %681 = vmatprep.mubr.f32.mxu0 0.0
    %682 = vmatmul.mubr.f32.gmra.mrb[0].mxu0 %v606
    %v683 = vpop.f32.mrb[0].mxu0
    %v684 = vadd.f32 0.0, %v683
    %v685 = vpop.f32.mrb[0].mxu0
    %686 = vmatprep.mubr.f32.mxu0 0.0
    %687 = vmatmul.mubr.f32.gmra.mrb[0].mxu0 %v609
    %v688 = vpop.f32.mrb[0].mxu0
    %v689 = vadd.f32 0.0, %v688
    %v690 = vpop.f32.mrb[0].mxu0
    %691 = vmatprep.mubr.f32.mxu0 0.0
    %692 = vmatmul.mubr.f32.gmra.mrb[0].mxu0 %v612
    %v693 = vpop.f32.mrb[0].mxu0
    %v694 = vadd.f32 0.0, %v693
    %v695 = vpop.f32.mrb[0].mxu0
    %696 = vmatprep.mubr.f32.mxu0 0.0
    %697 = vmatmul.mubr.f32.gmra.mrb[0].mxu0 %v615
    %v698 = vpop.f32.mrb[0].mxu0
    %v699 = vadd.f32 0.0, %v698
    %v700 = vpop.f32.mrb[0].mxu0
    %701 = vdwg.mxu0
    %v702 = vsel %vm59, %v586, 0.0
    %703 = vadd.xlane.f32.xlu0 %v702
    %v704 = vpop.xlane.xlu0 %703
    %v705 = vsel %vm59, %v588, 0.0
    %706 = vadd.xlane.f32.xlu0 %v705
    %v707 = vpop.xlane.xlu0 %706
    %v708 = vsel %vm59, %v590, 0.0
    %709 = vadd.xlane.f32.xlu0 %v708
    %v710 = vpop.xlane.xlu0 %709
    %v711 = vsel %vm59, %v592, 0.0
    %712 = vadd.xlane.f32.xlu0 %v711
    %v713 = vpop.xlane.xlu0 %712
    %v714 = vrcp.pop %v704
    %v715 = vrcp.pop %v707
    %v716 = vrcp.pop %v710
    %v717 = vrcp.pop %v713
    %v718 = vmul.f32 %v684, %v714
    %v719 = vmul.f32 %v689, %v715
    %v720 = vmul.f32 %v694, %v716
    %v721 = vmul.f32 %v699, %v717
    %722 = vrot.lane.b32.xlu0 %v139, 112
    %v723 = vpop.permute.xlu0 %722
    %724 = vrot.lane.b32.xlu0 %v144, 112
    %v725 = vpop.permute.xlu0 %724
    %726 = vrot.lane.b32.xlu0 %v149, 112
    %v727 = vpop.permute.xlu0 %726
    %728 = vrot.lane.b32.xlu0 %v154, 112
    %v729 = vpop.permute.xlu0 %728
    %730 = vrot.lane.b32.xlu0 %v139, 80
    %v731 = vpop.permute.xlu0 %730
    %732 = vrot.lane.b32.xlu0 %v144, 80
    %v733 = vpop.permute.xlu0 %732
    %734 = vrot.lane.b32.xlu0 %v149, 80
    %v735 = vpop.permute.xlu0 %734
    %736 = vrot.lane.b32.xlu0 %v154, 80
    %v737 = vpop.permute.xlu0 %736
    %v738 = vsel %vm169, %v723, 0
    %v740 = vsel %vm169, %v725, 0
    %v742 = vsel %vm169, %v727, 0
    %v744 = vsel %vm169, %v729, 0
    %v746 = vsel %vm169, %v731, 0
    %v748 = vsel %vm169, %v733, 0
    %v750 = vsel %vm169, %v735, 0
    %v752 = vsel %vm169, %v737, 0
    %754 = vmatprep.subr.mxu0 0.0
    %755 = vmatpush1.xpose.msra.mxu0 %v746
    %756 = vmatprep.subr.mxu0 0.0
    %757 = vmatpush1.xpose.msra.mxu0 %v748
    %758 = vmatprep.subr.mxu0 0.0
    %759 = vmatpush1.xpose.msra.mxu0 %v750
    %760 = vmatprep.subr.mxu0 0.0
    %761 = vmatpush1.xpose.msra.mxu0 %v752
    %762 = vmatprep.subr.mxu0 0.0
    %763 = vmatpush1.xpose.msra.mxu0 0.0
    %764 = vmatprep.subr.mxu0 0.0
    %765 = vmatpush1.xpose.msra.mxu0 0.0
    %766 = vmatprep.subr.mxu0 0.0
    %767 = vmatpush1.xpose.msra.mxu0 0.0
    %768 = vmatprep.subr.mxu0 0.0
    %769 = vmatpush1.xpose.msra.mxu0 0.0
    %770 = vmatprep.subr.mxu0 0.0
    %771 = vmatpush1.xpose.msra.mxu0 0.0
    %772 = vmatprep.subr.mxu0 0.0
    %773 = vmatpush1.xpose.msra.mxu0 0.0
    %774 = vmatprep.subr.mxu0 0.0
    %775 = vmatpush1.xpose.msra.mxu0 0.0
    %776 = vmatprep.subr.mxu0 0.0
    %777 = vmatpush1.xpose.msra.mxu0 0.0
    %778 = vmatprep.subr.mxu0 0.0
    %779 = vmatpush1.xpose.msra.mxu0 0.0
    %780 = vmatprep.subr.mxu0 0.0
    %781 = vmatpush1.xpose.msra.mxu0 0.0
    %782 = vmatprep.subr.mxu0 0.0
    %783 = vmatpush1.xpose.msra.mxu0 0.0
    %784 = vmatprep.subr.mxu0 0.0
    %785 = vmatpush1.xpose.msra.mxu0 0.0
    %786 = vmatprep.subr.mxu0 0.0
    %787 = vmatpush1.xpose.msra.mxu0 0.0
    %788 = vmatprep.subr.mxu0 0.0
    %789 = vmatpush1.xpose.msra.mxu0 0.0
    %790 = vmatprep.subr.mxu0 0.0
    %791 = vmatpush1.xpose.msra.mxu0 0.0
    %792 = vmatprep.subr.mxu0 0.0
    %793 = vmatpush1.xpose.msra.mxu0 0.0
    %794 = vmatprep.subr.mxu0 0.0
    %795 = vmatpush1.xpose.msra.mxu0 0.0
    %796 = vmatprep.subr.mxu0 0.0
    %797 = vmatpush1.xpose.msra.mxu0 0.0
    %798 = vmatprep.subr.mxu0 0.0
    %799 = vmatpush1.xpose.msra.mxu0 0.0
    %800 = vmatprep.subr.mxu0 0.0
    %801 = vmatpush1.xpose.msra.mxu0 0.0
    %802 = vmatprep.subr.mxu0 0.0
    %803 = vmatpush1.xpose.msra.mxu0 0.0
    %804 = vmatprep.subr.mxu0 0.0
    %805 = vmatpush1.xpose.msra.mxu0 0.0
    %806 = vmatprep.subr.mxu0 0.0
    %807 = vmatpush1.xpose.msra.mxu0 0.0
    %808 = vmatprep.subr.mxu0 0.0
    %809 = vmatpush1.xpose.msra.mxu0 0.0
    %810 = vmatprep.subr.mxu0 0.0
    %811 = vmatpush1.xpose.msra.mxu0 0.0
    %812 = vmatprep.subr.mxu0 0.0
    %813 = vmatpush1.xpose.msra.mxu0 0.0
    %814 = vmatprep.subr.mxu0 0.0
    %815 = vmatpush1.xpose.msra.mxu0 0.0
    %816 = vmatprep.subr.mxu0 0.0
    %817 = vmatpush1.xpose.msra.mxu0 0.0
    %818 = vmatprep.mubr.f32.mxu0 0.0
    %819 = vmatmul.mubr.f32.gmra.mrb[0].mxu0 %v738
    %v820 = vpop.f32.mrb[0].mxu0
    %v821 = vadd.f32 0.0, %v820
    %v822 = vpop.f32.mrb[0].mxu0
    %823 = vmatprep.mubr.f32.mxu0 0.0
    %824 = vmatmul.mubr.f32.gmra.mrb[0].mxu0 %v740
    %v825 = vpop.f32.mrb[0].mxu0
    %v826 = vadd.f32 0.0, %v825
    %v827 = vpop.f32.mrb[0].mxu0
    %828 = vmatprep.mubr.f32.mxu0 0.0
    %829 = vmatmul.mubr.f32.gmra.mrb[0].mxu0 %v742
    %v830 = vpop.f32.mrb[0].mxu0
    %v831 = vadd.f32 0.0, %v830
    %v832 = vpop.f32.mrb[0].mxu0
    %833 = vmatprep.mubr.f32.mxu0 0.0
    %834 = vmatmul.mubr.f32.gmra.mrb[0].mxu0 %v744
    %v835 = vpop.f32.mrb[0].mxu0
    %v836 = vadd.f32 0.0, %v835
    %v837 = vpop.f32.mrb[0].mxu0
    %838 = vdwg.mxu0
    %v839 = vmul.f32 %v821, 0.35355338
    %v840 = vmul.f32 %v826, 0.35355338
    %v841 = vmul.f32 %v831, 0.35355338
    %v842 = vmul.f32 %v836, 0.35355338
    %v843 = vadd.f32 %v839, %v276
    %v844 = vadd.f32 %v840, %v278
    %v845 = vadd.f32 %v841, %v280
    %v846 = vadd.f32 %v842, %v282
    %v847 = vsel %vm59, %v843, -inf
    %848 = vmax.xlane.f32.xlu0 %v847
    %v849 = vpop.xlane.xlu0 %848
    %v850 = vsel %vm59, %v844, -inf
    %851 = vmax.xlane.f32.xlu0 %v850
    %v852 = vpop.xlane.xlu0 %851
    %v853 = vsel %vm59, %v845, -inf
    %854 = vmax.xlane.f32.xlu0 %v853
    %v855 = vpop.xlane.xlu0 %854
    %v856 = vsel %vm59, %v846, -inf
    %857 = vmax.xlane.f32.xlu0 %v856
    %v858 = vpop.xlane.xlu0 %857
    %v859 = vsub.f32 %v843, %v849
    %v860 = vsub.f32 %v844, %v852
    %v861 = vsub.f32 %v845, %v855
    %v862 = vsub.f32 %v846, %v858
    %v863 = vmul.f32 %v859, 1.442695
    %v864 = vpow.pop %v863
    %v865 = vmul.f32 %v860, 1.442695
    %v866 = vpow.pop %v865
    %v867 = vmul.f32 %v861, 1.442695
    %v868 = vpow.pop %v867
    %v869 = vmul.f32 %v862, 1.442695
    %v870 = vpow.pop %v869
    %871 = vrot.lane.b32.xlu0 %v139, 48
    %v872 = vpop.permute.xlu0 %871
    %873 = vrot.lane.b32.xlu0 %v144, 48
    %v874 = vpop.permute.xlu0 %873
    %875 = vrot.lane.b32.xlu0 %v149, 48
    %v876 = vpop.permute.xlu0 %875
    %877 = vrot.lane.b32.xlu0 %v154, 48
    %v878 = vpop.permute.xlu0 %877
    %v884 = vsel %vm59, %v864, 0
    %v887 = vsel %vm59, %v866, 0
    %v890 = vsel %vm59, %v868, 0
    %v893 = vsel %vm59, %v870, 0
    %895 = vmatprep.subr.mxu0 0.0
    %896 = vmatpush1.msra.mxu0 %v872
    %897 = vmatprep.subr.mxu0 0.0
    %898 = vmatpush1.msra.mxu0 %v874
    %899 = vmatprep.subr.mxu0 0.0
    %900 = vmatpush1.msra.mxu0 %v876
    %901 = vmatprep.subr.mxu0 0.0
    %902 = vmatpush1.msra.mxu0 %v878
    %903 = vmatprep.subr.mxu0 0.0
    %904 = vmatpush1.msra.mxu0 0.0
    %905 = vmatprep.subr.mxu0 0.0
    %906 = vmatpush1.msra.mxu0 0.0
    %907 = vmatprep.subr.mxu0 0.0
    %908 = vmatpush1.msra.mxu0 0.0
    %909 = vmatprep.subr.mxu0 0.0
    %910 = vmatpush1.msra.mxu0 0.0
    %911 = vmatprep.subr.mxu0 0.0
    %912 = vmatpush1.msra.mxu0 0.0
    %913 = vmatprep.subr.mxu0 0.0
    %914 = vmatpush1.msra.mxu0 0.0
    %915 = vmatprep.subr.mxu0 0.0
    %916 = vmatpush1.msra.mxu0 0.0
    %917 = vmatprep.subr.mxu0 0.0
    %918 = vmatpush1.msra.mxu0 0.0
    %919 = vmatprep.subr.mxu0 0.0
    %920 = vmatpush1.msra.mxu0 0.0
    %921 = vmatprep.subr.mxu0 0.0
    %922 = vmatpush1.msra.mxu0 0.0
    %923 = vmatprep.subr.mxu0 0.0
    %924 = vmatpush1.msra.mxu0 0.0
    %925 = vmatprep.subr.mxu0 0.0
    %926 = vmatpush1.msra.mxu0 0.0
    %927 = vmatprep.subr.mxu0 0.0
    %928 = vmatpush1.msra.mxu0 0.0
    %929 = vmatprep.subr.mxu0 0.0
    %930 = vmatpush1.msra.mxu0 0.0
    %931 = vmatprep.subr.mxu0 0.0
    %932 = vmatpush1.msra.mxu0 0.0
    %933 = vmatprep.subr.mxu0 0.0
    %934 = vmatpush1.msra.mxu0 0.0
    %935 = vmatprep.subr.mxu0 0.0
    %936 = vmatpush1.msra.mxu0 0.0
    %937 = vmatprep.subr.mxu0 0.0
    %938 = vmatpush1.msra.mxu0 0.0
    %939 = vmatprep.subr.mxu0 0.0
    %940 = vmatpush1.msra.mxu0 0.0
    %941 = vmatprep.subr.mxu0 0.0
    %942 = vmatpush1.msra.mxu0 0.0
    %943 = vmatprep.subr.mxu0 0.0
    %944 = vmatpush1.msra.mxu0 0.0
    %945 = vmatprep.subr.mxu0 0.0
    %946 = vmatpush1.msra.mxu0 0.0
    %947 = vmatprep.subr.mxu0 0.0
    %948 = vmatpush1.msra.mxu0 0.0
    %949 = vmatprep.subr.mxu0 0.0
    %950 = vmatpush1.msra.mxu0 0.0
    %951 = vmatprep.subr.mxu0 0.0
    %952 = vmatpush1.msra.mxu0 0.0
    %953 = vmatprep.subr.mxu0 0.0
    %954 = vmatpush1.msra.mxu0 0.0
    %955 = vmatprep.subr.mxu0 0.0
    %956 = vmatpush1.msra.mxu0 0.0
    %957 = vmatprep.subr.mxu0 0.0
    %958 = vmatpush1.msra.mxu0 0.0
    %959 = vmatprep.mubr.f32.mxu0 0.0
    %960 = vmatmul.mubr.f32.gmra.mrb[0].mxu0 %v884
    %v961 = vpop.f32.mrb[0].mxu0
    %v962 = vadd.f32 0.0, %v961
    %v963 = vpop.f32.mrb[0].mxu0
    %964 = vmatprep.mubr.f32.mxu0 0.0
    %965 = vmatmul.mubr.f32.gmra.mrb[0].mxu0 %v887
    %v966 = vpop.f32.mrb[0].mxu0
    %v967 = vadd.f32 0.0, %v966
    %v968 = vpop.f32.mrb[0].mxu0
    %969 = vmatprep.mubr.f32.mxu0 0.0
    %970 = vmatmul.mubr.f32.gmra.mrb[0].mxu0 %v890
    %v971 = vpop.f32.mrb[0].mxu0
    %v972 = vadd.f32 0.0, %v971
    %v973 = vpop.f32.mrb[0].mxu0
    %974 = vmatprep.mubr.f32.mxu0 0.0
    %975 = vmatmul.mubr.f32.gmra.mrb[0].mxu0 %v893
    %v976 = vpop.f32.mrb[0].mxu0
    %v977 = vadd.f32 0.0, %v976
    %v978 = vpop.f32.mrb[0].mxu0
    %979 = vdwg.mxu0
    %v980 = vsel %vm59, %v864, 0.0
    %981 = vadd.xlane.f32.xlu0 %v980
    %v982 = vpop.xlane.xlu0 %981
    %v983 = vsel %vm59, %v866, 0.0
    %984 = vadd.xlane.f32.xlu0 %v983
    %v985 = vpop.xlane.xlu0 %984
    %v986 = vsel %vm59, %v868, 0.0
    %987 = vadd.xlane.f32.xlu0 %v986
    %v988 = vpop.xlane.xlu0 %987
    %v989 = vsel %vm59, %v870, 0.0
    %990 = vadd.xlane.f32.xlu0 %v989
    %v991 = vpop.xlane.xlu0 %990
    %v992 = vrcp.pop %v982
    %v993 = vrcp.pop %v985
    %v994 = vrcp.pop %v988
    %v995 = vrcp.pop %v991
    %v996 = vmul.f32 %v962, %v992
    %v997 = vmul.f32 %v967, %v993
    %v998 = vmul.f32 %v972, %v994
    %v999 = vmul.f32 %v977, %v995
    %1000 = vrot.lane.b32.xlu0 %v139, 104
    %v1001 = vpop.permute.xlu0 %1000
    %1002 = vrot.lane.b32.xlu0 %v144, 104
    %v1003 = vpop.permute.xlu0 %1002
    %1004 = vrot.lane.b32.xlu0 %v149, 104
    %v1005 = vpop.permute.xlu0 %1004
    %1006 = vrot.lane.b32.xlu0 %v154, 104
    %v1007 = vpop.permute.xlu0 %1006
    %1008 = vrot.lane.b32.xlu0 %v139, 72
    %v1009 = vpop.permute.xlu0 %1008
    %1010 = vrot.lane.b32.xlu0 %v144, 72
    %v1011 = vpop.permute.xlu0 %1010
    %1012 = vrot.lane.b32.xlu0 %v149, 72
    %v1013 = vpop.permute.xlu0 %1012
    %1014 = vrot.lane.b32.xlu0 %v154, 72
    %v1015 = vpop.permute.xlu0 %1014
    %v1016 = vsel %vm169, %v1001, 0
    %v1018 = vsel %vm169, %v1003, 0
    %v1020 = vsel %vm169, %v1005, 0
    %v1022 = vsel %vm169, %v1007, 0
    %v1024 = vsel %vm169, %v1009, 0
    %v1026 = vsel %vm169, %v1011, 0
    %v1028 = vsel %vm169, %v1013, 0
    %v1030 = vsel %vm169, %v1015, 0
    %1032 = vmatprep.subr.mxu0 0.0
    %1033 = vmatpush1.xpose.msra.mxu0 %v1024
    %1034 = vmatprep.subr.mxu0 0.0
    %1035 = vmatpush1.xpose.msra.mxu0 %v1026
    %1036 = vmatprep.subr.mxu0 0.0
    %1037 = vmatpush1.xpose.msra.mxu0 %v1028
    %1038 = vmatprep.subr.mxu0 0.0
    %1039 = vmatpush1.xpose.msra.mxu0 %v1030
    %1040 = vmatprep.subr.mxu0 0.0
    %1041 = vmatpush1.xpose.msra.mxu0 0.0
    %1042 = vmatprep.subr.mxu0 0.0
    %1043 = vmatpush1.xpose.msra.mxu0 0.0
    %1044 = vmatprep.subr.mxu0 0.0
    %1045 = vmatpush1.xpose.msra.mxu0 0.0
    %1046 = vmatprep.subr.mxu0 0.0
    %1047 = vmatpush1.xpose.msra.mxu0 0.0
    %1048 = vmatprep.subr.mxu0 0.0
    %1049 = vmatpush1.xpose.msra.mxu0 0.0
    %1050 = vmatprep.subr.mxu0 0.0
    %1051 = vmatpush1.xpose.msra.mxu0 0.0
    %1052 = vmatprep.subr.mxu0 0.0
    %1053 = vmatpush1.xpose.msra.mxu0 0.0
    %1054 = vmatprep.subr.mxu0 0.0
    %1055 = vmatpush1.xpose.msra.mxu0 0.0
    %1056 = vmatprep.subr.mxu0 0.0
    %1057 = vmatpush1.xpose.msra.mxu0 0.0
    %1058 = vmatprep.subr.mxu0 0.0
    %1059 = vmatpush1.xpose.msra.mxu0 0.0
    %1060 = vmatprep.subr.mxu0 0.0
    %1061 = vmatpush1.xpose.msra.mxu0 0.0
    %1062 = vmatprep.subr.mxu0 0.0
    %1063 = vmatpush1.xpose.msra.mxu0 0.0
    %1064 = vmatprep.subr.mxu0 0.0
    %1065 = vmatpush1.xpose.msra.mxu0 0.0
    %1066 = vmatprep.subr.mxu0 0.0
    %1067 = vmatpush1.xpose.msra.mxu0 0.0
    %1068 = vmatprep.subr.mxu0 0.0
    %1069 = vmatpush1.xpose.msra.mxu0 0.0
    %1070 = vmatprep.subr.mxu0 0.0
    %1071 = vmatpush1.xpose.msra.mxu0 0.0
    %1072 = vmatprep.subr.mxu0 0.0
    %1073 = vmatpush1.xpose.msra.mxu0 0.0
    %1074 = vmatprep.subr.mxu0 0.0
    %1075 = vmatpush1.xpose.msra.mxu0 0.0
    %1076 = vmatprep.subr.mxu0 0.0
    %1077 = vmatpush1.xpose.msra.mxu0 0.0
    %1078 = vmatprep.subr.mxu0 0.0
    %1079 = vmatpush1.xpose.msra.mxu0 0.0
    %1080 = vmatprep.subr.mxu0 0.0
    %1081 = vmatpush1.xpose.msra.mxu0 0.0
    %1082 = vmatprep.subr.mxu0 0.0
    %1083 = vmatpush1.xpose.msra.mxu0 0.0
    %1084 = vmatprep.subr.mxu0 0.0
    %1085 = vmatpush1.xpose.msra.mxu0 0.0
    %1086 = vmatprep.subr.mxu0 0.0
    %1087 = vmatpush1.xpose.msra.mxu0 0.0
    %1088 = vmatprep.subr.mxu0 0.0
    %1089 = vmatpush1.xpose.msra.mxu0 0.0
    %1090 = vmatprep.subr.mxu0 0.0
    %1091 = vmatpush1.xpose.msra.mxu0 0.0
    %1092 = vmatprep.subr.mxu0 0.0
    %1093 = vmatpush1.xpose.msra.mxu0 0.0
    %1094 = vmatprep.subr.mxu0 0.0
    %1095 = vmatpush1.xpose.msra.mxu0 0.0
    %1096 = vmatprep.mubr.f32.mxu0 0.0
    %1097 = vmatmul.mubr.f32.gmra.mrb[0].mxu0 %v1016
    %v1098 = vpop.f32.mrb[0].mxu0
    %v1099 = vadd.f32 0.0, %v1098
    %v1100 = vpop.f32.mrb[0].mxu0
    %1101 = vmatprep.mubr.f32.mxu0 0.0
    %1102 = vmatmul.mubr.f32.gmra.mrb[0].mxu0 %v1018
    %v1103 = vpop.f32.mrb[0].mxu0
    %v1104 = vadd.f32 0.0, %v1103
    %v1105 = vpop.f32.mrb[0].mxu0
    %1106 = vmatprep.mubr.f32.mxu0 0.0
    %1107 = vmatmul.mubr.f32.gmra.mrb[0].mxu0 %v1020
    %v1108 = vpop.f32.mrb[0].mxu0
    %v1109 = vadd.f32 0.0, %v1108
    %v1110 = vpop.f32.mrb[0].mxu0
    %1111 = vmatprep.mubr.f32.mxu0 0.0
    %1112 = vmatmul.mubr.f32.gmra.mrb[0].mxu0 %v1022
    %v1113 = vpop.f32.mrb[0].mxu0
    %v1114 = vadd.f32 0.0, %v1113
    %v1115 = vpop.f32.mrb[0].mxu0
    %1116 = vdwg.mxu0
    %v1117 = vmul.f32 %v1099, 0.35355338
    %v1118 = vmul.f32 %v1104, 0.35355338
    %v1119 = vmul.f32 %v1109, 0.35355338
    %v1120 = vmul.f32 %v1114, 0.35355338
    %v1121 = vadd.f32 %v1117, %v276
    %v1122 = vadd.f32 %v1118, %v278
    %v1123 = vadd.f32 %v1119, %v280
    %v1124 = vadd.f32 %v1120, %v282
    %v1125 = vsel %vm59, %v1121, -inf
    %1126 = vmax.xlane.f32.xlu0 %v1125
    %v1127 = vpop.xlane.xlu0 %1126
    %v1128 = vsel %vm59, %v1122, -inf
    %1129 = vmax.xlane.f32.xlu0 %v1128
    %v1130 = vpop.xlane.xlu0 %1129
    %v1131 = vsel %vm59, %v1123, -inf
    %1132 = vmax.xlane.f32.xlu0 %v1131
    %v1133 = vpop.xlane.xlu0 %1132
    %v1134 = vsel %vm59, %v1124, -inf
    %1135 = vmax.xlane.f32.xlu0 %v1134
    %v1136 = vpop.xlane.xlu0 %1135
    %v1137 = vsub.f32 %v1121, %v1127
    %v1138 = vsub.f32 %v1122, %v1130
    %v1139 = vsub.f32 %v1123, %v1133
    %v1140 = vsub.f32 %v1124, %v1136
    %v1141 = vmul.f32 %v1137, 1.442695
    %v1142 = vpow.pop %v1141
    %v1143 = vmul.f32 %v1138, 1.442695
    %v1144 = vpow.pop %v1143
    %v1145 = vmul.f32 %v1139, 1.442695
    %v1146 = vpow.pop %v1145
    %v1147 = vmul.f32 %v1140, 1.442695
    %v1148 = vpow.pop %v1147
    %1149 = vrot.lane.b32.xlu0 %v139, 40
    %v1150 = vpop.permute.xlu0 %1149
    %1151 = vrot.lane.b32.xlu0 %v144, 40
    %v1152 = vpop.permute.xlu0 %1151
    %1153 = vrot.lane.b32.xlu0 %v149, 40
    %v1154 = vpop.permute.xlu0 %1153
    %1155 = vrot.lane.b32.xlu0 %v154, 40
    %v1156 = vpop.permute.xlu0 %1155
    %v1162 = vsel %vm59, %v1142, 0
    %v1165 = vsel %vm59, %v1144, 0
    %v1168 = vsel %vm59, %v1146, 0
    %v1171 = vsel %vm59, %v1148, 0
    %1173 = vmatprep.subr.mxu0 0.0
    %1174 = vmatpush1.msra.mxu0 %v1150
    %1175 = vmatprep.subr.mxu0 0.0
    %1176 = vmatpush1.msra.mxu0 %v1152
    %1177 = vmatprep.subr.mxu0 0.0
    %1178 = vmatpush1.msra.mxu0 %v1154
    %1179 = vmatprep.subr.mxu0 0.0
    %1180 = vmatpush1.msra.mxu0 %v1156
    %1181 = vmatprep.subr.mxu0 0.0
    %1182 = vmatpush1.msra.mxu0 0.0
    %1183 = vmatprep.subr.mxu0 0.0
    %1184 = vmatpush1.msra.mxu0 0.0
    %1185 = vmatprep.subr.mxu0 0.0
    %1186 = vmatpush1.msra.mxu0 0.0
    %1187 = vmatprep.subr.mxu0 0.0
    %1188 = vmatpush1.msra.mxu0 0.0
    %1189 = vmatprep.subr.mxu0 0.0
    %1190 = vmatpush1.msra.mxu0 0.0
    %1191 = vmatprep.subr.mxu0 0.0
    %1192 = vmatpush1.msra.mxu0 0.0
    %1193 = vmatprep.subr.mxu0 0.0
    %1194 = vmatpush1.msra.mxu0 0.0
    %1195 = vmatprep.subr.mxu0 0.0
    %1196 = vmatpush1.msra.mxu0 0.0
    %1197 = vmatprep.subr.mxu0 0.0
    %1198 = vmatpush1.msra.mxu0 0.0
    %1199 = vmatprep.subr.mxu0 0.0
    %1200 = vmatpush1.msra.mxu0 0.0
    %1201 = vmatprep.subr.mxu0 0.0
    %1202 = vmatpush1.msra.mxu0 0.0
    %1203 = vmatprep.subr.mxu0 0.0
    %1204 = vmatpush1.msra.mxu0 0.0
    %1205 = vmatprep.subr.mxu0 0.0
    %1206 = vmatpush1.msra.mxu0 0.0
    %1207 = vmatprep.subr.mxu0 0.0
    %1208 = vmatpush1.msra.mxu0 0.0
    %1209 = vmatprep.subr.mxu0 0.0
    %1210 = vmatpush1.msra.mxu0 0.0
    %1211 = vmatprep.subr.mxu0 0.0
    %1212 = vmatpush1.msra.mxu0 0.0
    %1213 = vmatprep.subr.mxu0 0.0
    %1214 = vmatpush1.msra.mxu0 0.0
    %1215 = vmatprep.subr.mxu0 0.0
    %1216 = vmatpush1.msra.mxu0 0.0
    %1217 = vmatprep.subr.mxu0 0.0
    %1218 = vmatpush1.msra.mxu0 0.0
    %1219 = vmatprep.subr.mxu0 0.0
    %1220 = vmatpush1.msra.mxu0 0.0
    %1221 = vmatprep.subr.mxu0 0.0
    %1222 = vmatpush1.msra.mxu0 0.0
    %1223 = vmatprep.subr.mxu0 0.0
    %1224 = vmatpush1.msra.mxu0 0.0
    %1225 = vmatprep.subr.mxu0 0.0
    %1226 = vmatpush1.msra.mxu0 0.0
    %1227 = vmatprep.subr.mxu0 0.0
    %1228 = vmatpush1.msra.mxu0 0.0
    %1229 = vmatprep.subr.mxu0 0.0
    %1230 = vmatpush1.msra.mxu0 0.0
    %1231 = vmatprep.subr.mxu0 0.0
    %1232 = vmatpush1.msra.mxu0 0.0
    %1233 = vmatprep.subr.mxu0 0.0
    %1234 = vmatpush1.msra.mxu0 0.0
    %1235 = vmatprep.subr.mxu0 0.0
    %1236 = vmatpush1.msra.mxu0 0.0
    %1237 = vmatprep.mubr.f32.mxu0 0.0
    %1238 = vmatmul.mubr.f32.gmra.mrb[0].mxu0 %v1162
    %v1239 = vpop.f32.mrb[0].mxu0
    %v1240 = vadd.f32 0.0, %v1239
    %v1241 = vpop.f32.mrb[0].mxu0
    %1242 = vmatprep.mubr.f32.mxu0 0.0
    %1243 = vmatmul.mubr.f32.gmra.mrb[0].mxu0 %v1165
    %v1244 = vpop.f32.mrb[0].mxu0
    %v1245 = vadd.f32 0.0, %v1244
    %v1246 = vpop.f32.mrb[0].mxu0
    %1247 = vmatprep.mubr.f32.mxu0 0.0
    %1248 = vmatmul.mubr.f32.gmra.mrb[0].mxu0 %v1168
    %v1249 = vpop.f32.mrb[0].mxu0
    %v1250 = vadd.f32 0.0, %v1249
    %v1251 = vpop.f32.mrb[0].mxu0
    %1252 = vmatprep.mubr.f32.mxu0 0.0
    %1253 = vmatmul.mubr.f32.gmra.mrb[0].mxu0 %v1171
    %v1254 = vpop.f32.mrb[0].mxu0
    %v1255 = vadd.f32 0.0, %v1254
    %v1256 = vpop.f32.mrb[0].mxu0
    %1257 = vdwg.mxu0
    %v1258 = vsel %vm59, %v1142, 0.0
    %1259 = vadd.xlane.f32.xlu0 %v1258
    %v1260 = vpop.xlane.xlu0 %1259
    %v1261 = vsel %vm59, %v1144, 0.0
    %1262 = vadd.xlane.f32.xlu0 %v1261
    %v1263 = vpop.xlane.xlu0 %1262
    %v1264 = vsel %vm59, %v1146, 0.0
    %1265 = vadd.xlane.f32.xlu0 %v1264
    %v1266 = vpop.xlane.xlu0 %1265
    %v1267 = vsel %vm59, %v1148, 0.0
    %1268 = vadd.xlane.f32.xlu0 %v1267
    %v1269 = vpop.xlane.xlu0 %1268
    %v1270 = vrcp.pop %v1260
    %v1271 = vrcp.pop %v1263
    %v1272 = vrcp.pop %v1266
    %v1273 = vrcp.pop %v1269
    %v1274 = vmul.f32 %v1240, %v1270
    %v1275 = vmul.f32 %v1245, %v1271
    %v1276 = vmul.f32 %v1250, %v1272
    %v1277 = vmul.f32 %v1255, %v1273
    %1282 = vrot.lane.b32.xlu0 %v718, 8
    %v1283 = vpop.permute.xlu0 %1282
    %1284 = vrot.lane.b32.xlu0 %v719, 8
    %v1285 = vpop.permute.xlu0 %1284
    %1286 = vrot.lane.b32.xlu0 %v720, 8
    %v1287 = vpop.permute.xlu0 %1286
    %1288 = vrot.lane.b32.xlu0 %v721, 8
    %v1289 = vpop.permute.xlu0 %1288
    %1298 = vrot.lane.b32.xlu0 %v996, 16
    %v1299 = vpop.permute.xlu0 %1298
    %1300 = vrot.lane.b32.xlu0 %v997, 16
    %v1301 = vpop.permute.xlu0 %1300
    %1302 = vrot.lane.b32.xlu0 %v998, 16
    %v1303 = vpop.permute.xlu0 %1302
    %1304 = vrot.lane.b32.xlu0 %v999, 16
    %v1305 = vpop.permute.xlu0 %1304
    %1314 = vrot.lane.b32.xlu0 %v1274, 24
    %v1315 = vpop.permute.xlu0 %1314
    %1316 = vrot.lane.b32.xlu0 %v1275, 24
    %v1317 = vpop.permute.xlu0 %1316
    %1318 = vrot.lane.b32.xlu0 %v1276, 24
    %v1319 = vpop.permute.xlu0 %1318
    %1320 = vrot.lane.b32.xlu0 %v1277, 24
    %v1321 = vpop.permute.xlu0 %1320
    %v1326 = vsel %vm169, %v440, %v1283
    %v1327 = vsel %vm169, %v441, %v1285
    %v1328 = vsel %vm169, %v442, %v1287
    %v1329 = vsel %vm169, %v443, %v1289
    %vm1330 = vcmask 130048
    %v1331 = vsel %vm1330, %v1326, %v1299
    %v1332 = vsel %vm1330, %v1327, %v1301
    %v1333 = vsel %vm1330, %v1328, %v1303
    %v1334 = vsel %vm1330, %v1329, %v1305
    %vm1335 = vcmask 195584
    %v1336 = vsel %vm1335, %v1331, %v1315
    %v1337 = vsel %vm1335, %v1332, %v1317
    %v1338 = vsel %vm1335, %v1333, %v1319
    %v1339 = vsel %vm1335, %v1334, %v1321
    %v1340 = vlaneseq
    %v1341 = vshrl.u32 %v1340, 7
    %v1342 = vsub.s32 0, %v1341
    %v1343 = vrot.slane %v54, %v1342
    %1348 = vrot.lane.b32.xlu0 %v48, 96
    %v1349 = vpop.permute.xlu0 %1348
    %1350 = vrot.lane.b32.xlu0 %v49, 96
    %v1351 = vpop.permute.xlu0 %1350
    %1352 = vrot.lane.b32.xlu0 %v50, 96
    %v1353 = vpop.permute.xlu0 %1352
    %1354 = vrot.lane.b32.xlu0 %v51, 96
    %v1355 = vpop.permute.xlu0 %1354
    %v1360 = vsel %vm59, %v139, 0
    %v1362 = vsel %vm59, %v144, 0
    %v1364 = vsel %vm59, %v149, 0
    %v1366 = vsel %vm59, %v154, 0
    %1368 = vmatprep.subr.mxu0 0.0
    %1369 = vmatpush1.msra.mxu0 %v1349
    %1370 = vmatprep.subr.mxu0 0.0
    %1371 = vmatpush1.msra.mxu0 %v1351
    %1372 = vmatprep.subr.mxu0 0.0
    %1373 = vmatpush1.msra.mxu0 %v1353
    %1374 = vmatprep.subr.mxu0 0.0
    %1375 = vmatpush1.msra.mxu0 %v1355
    %1376 = vmatprep.subr.mxu0 0.0
    %1377 = vmatpush1.msra.mxu0 0.0
    %1378 = vmatprep.subr.mxu0 0.0
    %1379 = vmatpush1.msra.mxu0 0.0
    %1380 = vmatprep.subr.mxu0 0.0
    %1381 = vmatpush1.msra.mxu0 0.0
    %1382 = vmatprep.subr.mxu0 0.0
    %1383 = vmatpush1.msra.mxu0 0.0
    %1384 = vmatprep.subr.mxu0 0.0
    %1385 = vmatpush1.msra.mxu0 0.0
    %1386 = vmatprep.subr.mxu0 0.0
    %1387 = vmatpush1.msra.mxu0 0.0
    %1388 = vmatprep.subr.mxu0 0.0
    %1389 = vmatpush1.msra.mxu0 0.0
    %1390 = vmatprep.subr.mxu0 0.0
    %1391 = vmatpush1.msra.mxu0 0.0
    %1392 = vmatprep.subr.mxu0 0.0
    %1393 = vmatpush1.msra.mxu0 0.0
    %1394 = vmatprep.subr.mxu0 0.0
    %1395 = vmatpush1.msra.mxu0 0.0
    %1396 = vmatprep.subr.mxu0 0.0
    %1397 = vmatpush1.msra.mxu0 0.0
    %1398 = vmatprep.subr.mxu0 0.0
    %1399 = vmatpush1.msra.mxu0 0.0
    %1400 = vmatprep.subr.mxu0 0.0
    %1401 = vmatpush1.msra.mxu0 0.0
    %1402 = vmatprep.subr.mxu0 0.0
    %1403 = vmatpush1.msra.mxu0 0.0
    %1404 = vmatprep.subr.mxu0 0.0
    %1405 = vmatpush1.msra.mxu0 0.0
    %1406 = vmatprep.subr.mxu0 0.0
    %1407 = vmatpush1.msra.mxu0 0.0
    %1408 = vmatprep.subr.mxu0 0.0
    %1409 = vmatpush1.msra.mxu0 0.0
    %1410 = vmatprep.subr.mxu0 0.0
    %1411 = vmatpush1.msra.mxu0 0.0
    %1412 = vmatprep.subr.mxu0 0.0
    %1413 = vmatpush1.msra.mxu0 0.0
    %1414 = vmatprep.subr.mxu0 0.0
    %1415 = vmatpush1.msra.mxu0 0.0
    %1416 = vmatprep.subr.mxu0 0.0
    %1417 = vmatpush1.msra.mxu0 0.0
    %1418 = vmatprep.subr.mxu0 0.0
    %1419 = vmatpush1.msra.mxu0 0.0
    %1420 = vmatprep.subr.mxu0 0.0
    %1421 = vmatpush1.msra.mxu0 0.0
    %1422 = vmatprep.subr.mxu0 0.0
    %1423 = vmatpush1.msra.mxu0 0.0
    %1424 = vmatprep.subr.mxu0 0.0
    %1425 = vmatpush1.msra.mxu0 0.0
    %1426 = vmatprep.subr.mxu0 0.0
    %1427 = vmatpush1.msra.mxu0 0.0
    %1428 = vmatprep.subr.mxu0 0.0
    %1429 = vmatpush1.msra.mxu0 0.0
    %1430 = vmatprep.subr.mxu0 0.0
    %1431 = vmatpush1.msra.mxu0 0.0
    %1432 = vmatprep.mubr.f32.mxu0 0.0
    %1433 = vmatmul.mubr.f32.gmra.mrb[0].mxu0 %v1360
    %v1434 = vpop.f32.mrb[0].mxu0
    %v1435 = vadd.f32 %v1343, %v1434
    %v1436 = vpop.f32.mrb[0].mxu0
    %1437 = vmatprep.mubr.f32.mxu0 0.0
    %1438 = vmatmul.mubr.f32.gmra.mrb[0].mxu0 %v1362
    %v1439 = vpop.f32.mrb[0].mxu0
    %v1440 = vadd.f32 %v1343, %v1439
    %v1441 = vpop.f32.mrb[0].mxu0
    %1442 = vmatprep.mubr.f32.mxu0 0.0
    %1443 = vmatmul.mubr.f32.gmra.mrb[0].mxu0 %v1364
    %v1444 = vpop.f32.mrb[0].mxu0
    %v1445 = vadd.f32 %v1343, %v1444
    %v1446 = vpop.f32.mrb[0].mxu0
    %1447 = vmatprep.mubr.f32.mxu0 0.0
    %1448 = vmatmul.mubr.f32.gmra.mrb[0].mxu0 %v1366
    %v1449 = vpop.f32.mrb[0].mxu0
    %v1450 = vadd.f32 %v1343, %v1449
    %v1451 = vpop.f32.mrb[0].mxu0
    %1452 = vdwg.mxu0
    %1453 = vrot.lane.b32.xlu0 %v48, 88
    %v1454 = vpop.permute.xlu0 %1453
    %1455 = vrot.lane.b32.xlu0 %v49, 88
    %v1456 = vpop.permute.xlu0 %1455
    %1457 = vrot.lane.b32.xlu0 %v50, 88
    %v1458 = vpop.permute.xlu0 %1457
    %1459 = vrot.lane.b32.xlu0 %v51, 88
    %v1460 = vpop.permute.xlu0 %1459
    %1466 = vrot.lane.b32.xlu0 %v1343, 120
    %v1467 = vpop.permute.xlu0 %1466
    %v1470 = vsel %vm59, %v1336, 0
    %v1473 = vsel %vm59, %v1337, 0
    %v1476 = vsel %vm59, %v1338, 0
    %v1479 = vsel %vm59, %v1339, 0
    %1481 = vmatprep.subr.mxu0 0.0
    %1482 = vmatpush1.msra.mxu0 %v1454
    %1483 = vmatprep.subr.mxu0 0.0
    %1484 = vmatpush1.msra.mxu0 %v1456
    %1485 = vmatprep.subr.mxu0 0.0
    %1486 = vmatpush1.msra.mxu0 %v1458
    %1487 = vmatprep.subr.mxu0 0.0
    %1488 = vmatpush1.msra.mxu0 %v1460
    %1489 = vmatprep.subr.mxu0 0.0
    %1490 = vmatpush1.msra.mxu0 0.0
    %1491 = vmatprep.subr.mxu0 0.0
    %1492 = vmatpush1.msra.mxu0 0.0
    %1493 = vmatprep.subr.mxu0 0.0
    %1494 = vmatpush1.msra.mxu0 0.0
    %1495 = vmatprep.subr.mxu0 0.0
    %1496 = vmatpush1.msra.mxu0 0.0
    %1497 = vmatprep.subr.mxu0 0.0
    %1498 = vmatpush1.msra.mxu0 0.0
    %1499 = vmatprep.subr.mxu0 0.0
    %1500 = vmatpush1.msra.mxu0 0.0
    %1501 = vmatprep.subr.mxu0 0.0
    %1502 = vmatpush1.msra.mxu0 0.0
    %1503 = vmatprep.subr.mxu0 0.0
    %1504 = vmatpush1.msra.mxu0 0.0
    %1505 = vmatprep.subr.mxu0 0.0
    %1506 = vmatpush1.msra.mxu0 0.0
    %1507 = vmatprep.subr.mxu0 0.0
    %1508 = vmatpush1.msra.mxu0 0.0
    %1509 = vmatprep.subr.mxu0 0.0
    %1510 = vmatpush1.msra.mxu0 0.0
    %1511 = vmatprep.subr.mxu0 0.0
    %1512 = vmatpush1.msra.mxu0 0.0
    %1513 = vmatprep.subr.mxu0 0.0
    %1514 = vmatpush1.msra.mxu0 0.0
    %1515 = vmatprep.subr.mxu0 0.0
    %1516 = vmatpush1.msra.mxu0 0.0
    %1517 = vmatprep.subr.mxu0 0.0
    %1518 = vmatpush1.msra.mxu0 0.0
    %1519 = vmatprep.subr.mxu0 0.0
    %1520 = vmatpush1.msra.mxu0 0.0
    %1521 = vmatprep.subr.mxu0 0.0
    %1522 = vmatpush1.msra.mxu0 0.0
    %1523 = vmatprep.subr.mxu0 0.0
    %1524 = vmatpush1.msra.mxu0 0.0
    %1525 = vmatprep.subr.mxu0 0.0
    %1526 = vmatpush1.msra.mxu0 0.0
    %1527 = vmatprep.subr.mxu0 0.0
    %1528 = vmatpush1.msra.mxu0 0.0
    %1529 = vmatprep.subr.mxu0 0.0
    %1530 = vmatpush1.msra.mxu0 0.0
    %1531 = vmatprep.subr.mxu0 0.0
    %1532 = vmatpush1.msra.mxu0 0.0
    %1533 = vmatprep.subr.mxu0 0.0
    %1534 = vmatpush1.msra.mxu0 0.0
    %1535 = vmatprep.subr.mxu0 0.0
    %1536 = vmatpush1.msra.mxu0 0.0
    %1537 = vmatprep.subr.mxu0 0.0
    %1538 = vmatpush1.msra.mxu0 0.0
    %1539 = vmatprep.subr.mxu0 0.0
    %1540 = vmatpush1.msra.mxu0 0.0
    %1541 = vmatprep.subr.mxu0 0.0
    %1542 = vmatpush1.msra.mxu0 0.0
    %1543 = vmatprep.subr.mxu0 0.0
    %1544 = vmatpush1.msra.mxu0 0.0
    %1545 = vmatprep.mubr.f32.mxu0 0.0
    %1546 = vmatmul.mubr.f32.gmra.mrb[0].mxu0 %v1470
    %v1547 = vpop.f32.mrb[0].mxu0
    %v1548 = vadd.f32 %v1467, %v1547
    %v1549 = vpop.f32.mrb[0].mxu0
    %1550 = vmatprep.mubr.f32.mxu0 0.0
    %1551 = vmatmul.mubr.f32.gmra.mrb[0].mxu0 %v1473
    %v1552 = vpop.f32.mrb[0].mxu0
    %v1553 = vadd.f32 %v1467, %v1552
    %v1554 = vpop.f32.mrb[0].mxu0
    %1555 = vmatprep.mubr.f32.mxu0 0.0
    %1556 = vmatmul.mubr.f32.gmra.mrb[0].mxu0 %v1476
    %v1557 = vpop.f32.mrb[0].mxu0
    %v1558 = vadd.f32 %v1467, %v1557
    %v1559 = vpop.f32.mrb[0].mxu0
    %1560 = vmatprep.mubr.f32.mxu0 0.0
    %1561 = vmatmul.mubr.f32.gmra.mrb[0].mxu0 %v1479
    %v1562 = vpop.f32.mrb[0].mxu0
    %v1563 = vadd.f32 %v1467, %v1562
    %v1564 = vpop.f32.mrb[0].mxu0
    %1565 = vdwg.mxu0
    %v1566 = vmul.f32 %v1548, 0.5
    %v1567 = vmul.f32 %v1553, 0.5
    %v1568 = vmul.f32 %v1558, 0.5
    %v1569 = vmul.f32 %v1563, 0.5
    %v1570 = vmul.f32 %v1548, 0.70710677
    %v1571 = vmul.f32 %v1553, 0.70710677
    %v1572 = vmul.f32 %v1558, 0.70710677
    %v1573 = vmul.f32 %v1563, 0.70710677
    %v1574 = verf.f32.pop %v1570
    %v1575 = verf.f32.pop %v1571
    %v1576 = verf.f32.pop %v1572
    %v1577 = verf.f32.pop %v1573
    %v1578 = vadd.f32 %v1574, 1.0
    %v1579 = vadd.f32 %v1575, 1.0
    %v1580 = vadd.f32 %v1576, 1.0
    %v1581 = vadd.f32 %v1577, 1.0
    %v1582 = vmul.f32 %v1566, %v1578
    %v1583 = vmul.f32 %v1567, %v1579
    %v1584 = vmul.f32 %v1568, %v1580
    %v1585 = vmul.f32 %v1569, %v1581
    %1586 = vrot.lane.b32.xlu0 %v48, 72
    %v1587 = vpop.permute.xlu0 %1586
    %1588 = vrot.lane.b32.xlu0 %v49, 72
    %v1589 = vpop.permute.xlu0 %1588
    %1592 = vrot.lane.b32.xlu0 %v1343, 104
    %v1593 = vpop.permute.xlu0 %1592
    %v1596 = vsel %vm1330, %v1582, 0
    %v1599 = vsel %vm1330, %v1583, 0
    %v1602 = vsel %vm1330, %v1584, 0
    %v1605 = vsel %vm1330, %v1585, 0
    %1607 = vmatprep.subr.mxu0 0.0
    %1608 = vmatpush1.msra.mxu0 %v1587
    %1609 = vmatprep.subr.mxu0 0.0
    %1610 = vmatpush1.msra.mxu0 %v1589
    %1611 = vmatprep.subr.mxu0 0.0
    %1612 = vmatpush1.msra.mxu0 0.0
    %1613 = vmatprep.subr.mxu0 0.0
    %1614 = vmatpush1.msra.mxu0 0.0
    %1615 = vmatprep.subr.mxu0 0.0
    %1616 = vmatpush1.msra.mxu0 0.0
    %1617 = vmatprep.subr.mxu0 0.0
    %1618 = vmatpush1.msra.mxu0 0.0
    %1619 = vmatprep.subr.mxu0 0.0
    %1620 = vmatpush1.msra.mxu0 0.0
    %1621 = vmatprep.subr.mxu0 0.0
    %1622 = vmatpush1.msra.mxu0 0.0
    %1623 = vmatprep.subr.mxu0 0.0
    %1624 = vmatpush1.msra.mxu0 0.0
    %1625 = vmatprep.subr.mxu0 0.0
    %1626 = vmatpush1.msra.mxu0 0.0
    %1627 = vmatprep.subr.mxu0 0.0
    %1628 = vmatpush1.msra.mxu0 0.0
    %1629 = vmatprep.subr.mxu0 0.0
    %1630 = vmatpush1.msra.mxu0 0.0
    %1631 = vmatprep.subr.mxu0 0.0
    %1632 = vmatpush1.msra.mxu0 0.0
    %1633 = vmatprep.subr.mxu0 0.0
    %1634 = vmatpush1.msra.mxu0 0.0
    %1635 = vmatprep.subr.mxu0 0.0
    %1636 = vmatpush1.msra.mxu0 0.0
    %1637 = vmatprep.subr.mxu0 0.0
    %1638 = vmatpush1.msra.mxu0 0.0
    %1639 = vmatprep.subr.mxu0 0.0
    %1640 = vmatpush1.msra.mxu0 0.0
    %1641 = vmatprep.subr.mxu0 0.0
    %1642 = vmatpush1.msra.mxu0 0.0
    %1643 = vmatprep.subr.mxu0 0.0
    %1644 = vmatpush1.msra.mxu0 0.0
    %1645 = vmatprep.subr.mxu0 0.0
    %1646 = vmatpush1.msra.mxu0 0.0
    %1647 = vmatprep.subr.mxu0 0.0
    %1648 = vmatpush1.msra.mxu0 0.0
    %1649 = vmatprep.subr.mxu0 0.0
    %1650 = vmatpush1.msra.mxu0 0.0
    %1651 = vmatprep.subr.mxu0 0.0
    %1652 = vmatpush1.msra.mxu0 0.0
    %1653 = vmatprep.subr.mxu0 0.0
    %1654 = vmatpush1.msra.mxu0 0.0
    %1655 = vmatprep.subr.mxu0 0.0
    %1656 = vmatpush1.msra.mxu0 0.0
    %1657 = vmatprep.subr.mxu0 0.0
    %1658 = vmatpush1.msra.mxu0 0.0
    %1659 = vmatprep.subr.mxu0 0.0
    %1660 = vmatpush1.msra.mxu0 0.0
    %1661 = vmatprep.subr.mxu0 0.0
    %1662 = vmatpush1.msra.mxu0 0.0
    %1663 = vmatprep.subr.mxu0 0.0
    %1664 = vmatpush1.msra.mxu0 0.0
    %1665 = vmatprep.subr.mxu0 0.0
    %1666 = vmatpush1.msra.mxu0 0.0
    %1667 = vmatprep.subr.mxu0 0.0
    %1668 = vmatpush1.msra.mxu0 0.0
    %1669 = vmatprep.subr.mxu0 0.0
    %1670 = vmatpush1.msra.mxu0 0.0
    %1671 = vmatprep.mubr.f32.mxu0 0.0
    %1672 = vmatmul.mubr.f32.gmra.mrb[0].mxu0 %v1596
    %v1673 = vpop.f32.mrb[0].mxu0
    %v1674 = vadd.f32 %v1593, %v1673
    %v1675 = vpop.f32.mrb[0].mxu0
    %1676 = vmatprep.mubr.f32.mxu0 0.0
    %1677 = vmatmul.mubr.f32.gmra.mrb[0].mxu0 %v1599
    %v1678 = vpop.f32.mrb[0].mxu0
    %v1679 = vadd.f32 %v1593, %v1678
    %v1680 = vpop.f32.mrb[0].mxu0
    %1681 = vmatprep.mubr.f32.mxu0 0.0
    %1682 = vmatmul.mubr.f32.gmra.mrb[0].mxu0 %v1602
    %v1683 = vpop.f32.mrb[0].mxu0
    %v1684 = vadd.f32 %v1593, %v1683
    %v1685 = vpop.f32.mrb[0].mxu0
    %1686 = vmatprep.mubr.f32.mxu0 0.0
    %1687 = vmatmul.mubr.f32.gmra.mrb[0].mxu0 %v1605
    %v1688 = vpop.f32.mrb[0].mxu0
    %v1689 = vadd.f32 %v1593, %v1688
    %v1690 = vpop.f32.mrb[0].mxu0
    %1691 = vdwg.mxu0
    %v1692 = vlaneseq
    %v1693 = vshrl.u32 %v1692, 7
    %v1694 = vsub.s32 0, %v1693
    %v1695 = vrot.slane %v53, %v1694
    %1696 = vmatprep.subr.mxu0 0.0
    %1697 = vmatpush1.msra.mxu0 %v48
    %1698 = vmatprep.subr.mxu0 0.0
    %1699 = vmatpush1.msra.mxu0 %v49
    %1700 = vmatprep.subr.mxu0 0.0
    %1701 = vmatpush1.msra.mxu0 %v50
    %1702 = vmatprep.subr.mxu0 0.0
    %1703 = vmatpush1.msra.mxu0 %v51
    %1704 = vmatprep.subr.mxu0 0.0
    %1705 = vmatpush1.msra.mxu0 0.0
    %1706 = vmatprep.subr.mxu0 0.0
    %1707 = vmatpush1.msra.mxu0 0.0
    %1708 = vmatprep.subr.mxu0 0.0
    %1709 = vmatpush1.msra.mxu0 0.0
    %1710 = vmatprep.subr.mxu0 0.0
    %1711 = vmatpush1.msra.mxu0 0.0
    %1712 = vmatprep.subr.mxu0 0.0
    %1713 = vmatpush1.msra.mxu0 0.0
    %1714 = vmatprep.subr.mxu0 0.0
    %1715 = vmatpush1.msra.mxu0 0.0
    %1716 = vmatprep.subr.mxu0 0.0
    %1717 = vmatpush1.msra.mxu0 0.0
    %1718 = vmatprep.subr.mxu0 0.0
    %1719 = vmatpush1.msra.mxu0 0.0
    %1720 = vmatprep.subr.mxu0 0.0
    %1721 = vmatpush1.msra.mxu0 0.0
    %1722 = vmatprep.subr.mxu0 0.0
    %1723 = vmatpush1.msra.mxu0 0.0
    %1724 = vmatprep.subr.mxu0 0.0
    %1725 = vmatpush1.msra.mxu0 0.0
    %1726 = vmatprep.subr.mxu0 0.0
    %1727 = vmatpush1.msra.mxu0 0.0
    %1728 = vmatprep.subr.mxu0 0.0
    %1729 = vmatpush1.msra.mxu0 0.0
    %1730 = vmatprep.subr.mxu0 0.0
    %1731 = vmatpush1.msra.mxu0 0.0
    %1732 = vmatprep.subr.mxu0 0.0
    %1733 = vmatpush1.msra.mxu0 0.0
    %1734 = vmatprep.subr.mxu0 0.0
    %1735 = vmatpush1.msra.mxu0 0.0
    %1736 = vmatprep.subr.mxu0 0.0
    %1737 = vmatpush1.msra.mxu0 0.0
    %1738 = vmatprep.subr.mxu0 0.0
    %1739 = vmatpush1.msra.mxu0 0.0
    %1740 = vmatprep.subr.mxu0 0.0
    %1741 = vmatpush1.msra.mxu0 0.0
    %1742 = vmatprep.subr.mxu0 0.0
    %1743 = vmatpush1.msra.mxu0 0.0
    %1744 = vmatprep.subr.mxu0 0.0
    %1745 = vmatpush1.msra.mxu0 0.0
    %1746 = vmatprep.subr.mxu0 0.0
    %1747 = vmatpush1.msra.mxu0 0.0
    %1748 = vmatprep.subr.mxu0 0.0
    %1749 = vmatpush1.msra.mxu0 0.0
    %1750 = vmatprep.subr.mxu0 0.0
    %1751 = vmatpush1.msra.mxu0 0.0
    %1752 = vmatprep.subr.mxu0 0.0
    %1753 = vmatpush1.msra.mxu0 0.0
    %1754 = vmatprep.subr.mxu0 0.0
    %1755 = vmatpush1.msra.mxu0 0.0
    %1756 = vmatprep.subr.mxu0 0.0
    %1757 = vmatpush1.msra.mxu0 0.0
    %1758 = vmatprep.subr.mxu0 0.0
    %1759 = vmatpush1.msra.mxu0 0.0
    %1760 = vmatprep.mubr.f32.mxu0 0.0
    %1761 = vmatmul.mubr.f32.gmra.mrb[0].mxu0 %v1470
    %v1762 = vpop.f32.mrb[0].mxu0
    %v1763 = vadd.f32 %v1695, %v1762
    %v1764 = vpop.f32.mrb[0].mxu0
    %1765 = vmatprep.mubr.f32.mxu0 0.0
    %1766 = vmatmul.mubr.f32.gmra.mrb[0].mxu0 %v1473
    %v1767 = vpop.f32.mrb[0].mxu0
    %v1768 = vadd.f32 %v1695, %v1767
    %v1769 = vpop.f32.mrb[0].mxu0
    %1770 = vmatprep.mubr.f32.mxu0 0.0
    %1771 = vmatmul.mubr.f32.gmra.mrb[0].mxu0 %v1476
    %v1772 = vpop.f32.mrb[0].mxu0
    %v1773 = vadd.f32 %v1695, %v1772
    %v1774 = vpop.f32.mrb[0].mxu0
    %1775 = vmatprep.mubr.f32.mxu0 0.0
    %1776 = vmatmul.mubr.f32.gmra.mrb[0].mxu0 %v1479
    %v1777 = vpop.f32.mrb[0].mxu0
    %v1778 = vadd.f32 %v1695, %v1777
    %v1779 = vpop.f32.mrb[0].mxu0
    %1780 = vdwg.mxu0
    %v1781 = vadd.f32 %v1763, %v40
    %v1782 = vadd.f32 %v1768, %v41
    %v1783 = vadd.f32 %v1773, %v42
    %v1784 = vadd.f32 %v1778, %v43
    %v1785 = vsel %vm59, %v1781, 0.0
    %1786 = vadd.xlane.f32.xlu0 %v1785
    %v1787 = vpop.xlane.xlu0 %1786
    %v1788 = vsel %vm59, %v1782, 0.0
    %1789 = vadd.xlane.f32.xlu0 %v1788
    %v1790 = vpop.xlane.xlu0 %1789
    %v1791 = vsel %vm59, %v1783, 0.0
    %1792 = vadd.xlane.f32.xlu0 %v1791
    %v1793 = vpop.xlane.xlu0 %1792
    %v1794 = vsel %vm59, %v1784, 0.0
    %1795 = vadd.xlane.f32.xlu0 %v1794
    %v1796 = vpop.xlane.xlu0 %1795
    %v1797 = vrcp.pop 32.0
    %v1798 = vmul.f32 %v1787, %v1797
    %v1799 = vmul.f32 %v1790, %v1797
    %v1800 = vmul.f32 %v1793, %v1797
    %v1801 = vmul.f32 %v1796, %v1797
    %v1802 = vsub.f32 %v1781, %v1798
    %v1803 = vsub.f32 %v1782, %v1799
    %v1804 = vsub.f32 %v1783, %v1800
    %v1805 = vsub.f32 %v1784, %v1801
    %v1806 = vmul.f32 %v1802, %v1802
    %v1807 = vmul.f32 %v1803, %v1803
    %v1808 = vmul.f32 %v1804, %v1804
    %v1809 = vmul.f32 %v1805, %v1805
    %v1810 = vsel %vm59, %v1806, 0.0
    %1811 = vadd.xlane.f32.xlu0 %v1810
    %v1812 = vpop.xlane.xlu0 %1811
    %v1813 = vsel %vm59, %v1807, 0.0
    %1814 = vadd.xlane.f32.xlu0 %v1813
    %v1815 = vpop.xlane.xlu0 %1814
    %v1816 = vsel %vm59, %v1808, 0.0
    %1817 = vadd.xlane.f32.xlu0 %v1816
    %v1818 = vpop.xlane.xlu0 %1817
    %v1819 = vsel %vm59, %v1809, 0.0
    %1820 = vadd.xlane.f32.xlu0 %v1819
    %v1821 = vpop.xlane.xlu0 %1820
    %v1822 = vmul.f32 %v1812, %v1797
    %v1823 = vmul.f32 %v1815, %v1797
    %v1824 = vmul.f32 %v1818, %v1797
    %v1825 = vmul.f32 %v1821, %v1797
    %v1826 = vadd.f32 %v1822, 1e-05
    %v1827 = vadd.f32 %v1823, 1e-05
    %v1828 = vadd.f32 %v1824, 1e-05
    %v1829 = vadd.f32 %v1825, 1e-05
    %v1830 = vrsqrt.pop %v1826
    %v1831 = vrsqrt.pop %v1827
    %v1832 = vrsqrt.pop %v1828
    %v1833 = vrsqrt.pop %v1829
    %v1834 = vmul.f32 %v1802, %v1830
    %v1835 = vmul.f32 %v1803, %v1831
    %v1836 = vmul.f32 %v1804, %v1832
    %v1837 = vmul.f32 %v1805, %v1833
    %1839 = vrot.lane.b32.xlu0 %v1695, 96
    %v1840 = vpop.permute.xlu0 %1839
    %v1842 = vmul.f32 %v1834, %v1840
    %v1843 = vmul.f32 %v1835, %v1840
    %v1844 = vmul.f32 %v1836, %v1840
    %v1845 = vmul.f32 %v1837, %v1840
    %1846 = vrot.lane.b32.xlu0 %v1695, 64
    %v1847 = vpop.permute.xlu0 %1846
    %v1849 = vadd.f32 %v1842, %v1847
    %v1850 = vadd.f32 %v1843, %v1847
    %v1851 = vadd.f32 %v1844, %v1847
    %v1852 = vadd.f32 %v1845, %v1847
    %1857 = vrot.lane.b32.xlu0 %v1674, 126
    %v1858 = vpop.permute.xlu0 %1857
    %1859 = vrot.lane.b32.xlu0 %v1679, 126
    %v1860 = vpop.permute.xlu0 %1859
    %1861 = vrot.lane.b32.xlu0 %v1684, 126
    %v1862 = vpop.permute.xlu0 %1861
    %1863 = vrot.lane.b32.xlu0 %v1689, 126
    %v1864 = vpop.permute.xlu0 %1863
    %v1869 = vmax.f32 %v1674, %v1858
    %v1870 = vmax.f32 %v1679, %v1860
    %v1871 = vmax.f32 %v1684, %v1862
    %v1872 = vmax.f32 %v1689, %v1864
    %1873 = vrot.lane.b32.xlu0 %v1674, 124
    %v1874 = vpop.permute.xlu0 %1873
    %1875 = vrot.lane.b32.xlu0 %v1679, 124
    %v1876 = vpop.permute.xlu0 %1875
    %1877 = vrot.lane.b32.xlu0 %v1684, 124
    %v1878 = vpop.permute.xlu0 %1877
    %1879 = vrot.lane.b32.xlu0 %v1689, 124
    %v1880 = vpop.permute.xlu0 %1879
    %v1885 = vmax.f32 %v1869, %v1874
    %v1886 = vmax.f32 %v1870, %v1876
    %v1887 = vmax.f32 %v1871, %v1878
    %v1888 = vmax.f32 %v1872, %v1880
    %1889 = vrot.lane.b32.xlu0 %v1674, 122
    %v1890 = vpop.permute.xlu0 %1889
    %1891 = vrot.lane.b32.xlu0 %v1679, 122
    %v1892 = vpop.permute.xlu0 %1891
    %1893 = vrot.lane.b32.xlu0 %v1684, 122
    %v1894 = vpop.permute.xlu0 %1893
    %1895 = vrot.lane.b32.xlu0 %v1689, 122
    %v1896 = vpop.permute.xlu0 %1895
    %v1901 = vmax.f32 %v1885, %v1890
    %v1902 = vmax.f32 %v1886, %v1892
    %v1903 = vmax.f32 %v1887, %v1894
    %v1904 = vmax.f32 %v1888, %v1896
    %v1905 = vsub.f32 %v1674, %v1901
    %v1906 = vsub.f32 %v1679, %v1902
    %v1907 = vsub.f32 %v1684, %v1903
    %v1908 = vsub.f32 %v1689, %v1904
    %v1909 = vmul.f32 %v1905, 1.442695
    %v1910 = vpow.pop %v1909
    %v1911 = vmul.f32 %v1906, 1.442695
    %v1912 = vpow.pop %v1911
    %v1913 = vmul.f32 %v1907, 1.442695
    %v1914 = vpow.pop %v1913
    %v1915 = vmul.f32 %v1908, 1.442695
    %v1916 = vpow.pop %v1915
    %1921 = vrot.lane.b32.xlu0 %v1901, 2
    %v1922 = vpop.permute.xlu0 %1921
    %1923 = vrot.lane.b32.xlu0 %v1902, 2
    %v1924 = vpop.permute.xlu0 %1923
    %1925 = vrot.lane.b32.xlu0 %v1903, 2
    %v1926 = vpop.permute.xlu0 %1925
    %1927 = vrot.lane.b32.xlu0 %v1904, 2
    %v1928 = vpop.permute.xlu0 %1927
    %v1933 = vsub.f32 %v1674, %v1922
    %v1934 = vsub.f32 %v1679, %v1924
    %v1935 = vsub.f32 %v1684, %v1926
    %v1936 = vsub.f32 %v1689, %v1928
    %v1937 = vmul.f32 %v1933, 1.442695
    %v1938 = vpow.pop %v1937
    %v1939 = vmul.f32 %v1934, 1.442695
    %v1940 = vpow.pop %v1939
    %v1941 = vmul.f32 %v1935, 1.442695
    %v1942 = vpow.pop %v1941
    %v1943 = vmul.f32 %v1936, 1.442695
    %v1944 = vpow.pop %v1943
    %1945 = vrot.lane.b32.xlu0 %v1901, 4
    %v1946 = vpop.permute.xlu0 %1945
    %1947 = vrot.lane.b32.xlu0 %v1902, 4
    %v1948 = vpop.permute.xlu0 %1947
    %1949 = vrot.lane.b32.xlu0 %v1903, 4
    %v1950 = vpop.permute.xlu0 %1949
    %1951 = vrot.lane.b32.xlu0 %v1904, 4
    %v1952 = vpop.permute.xlu0 %1951
    %v1957 = vsub.f32 %v1674, %v1946
    %v1958 = vsub.f32 %v1679, %v1948
    %v1959 = vsub.f32 %v1684, %v1950
    %v1960 = vsub.f32 %v1689, %v1952
    %v1961 = vmul.f32 %v1957, 1.442695
    %v1962 = vpow.pop %v1961
    %v1963 = vmul.f32 %v1958, 1.442695
    %v1964 = vpow.pop %v1963
    %v1965 = vmul.f32 %v1959, 1.442695
    %v1966 = vpow.pop %v1965
    %v1967 = vmul.f32 %v1960, 1.442695
    %v1968 = vpow.pop %v1967
    %1969 = vrot.lane.b32.xlu0 %v1901, 6
    %v1970 = vpop.permute.xlu0 %1969
    %1971 = vrot.lane.b32.xlu0 %v1902, 6
    %v1972 = vpop.permute.xlu0 %1971
    %1973 = vrot.lane.b32.xlu0 %v1903, 6
    %v1974 = vpop.permute.xlu0 %1973
    %1975 = vrot.lane.b32.xlu0 %v1904, 6
    %v1976 = vpop.permute.xlu0 %1975
    %v1981 = vsub.f32 %v1674, %v1970
    %v1982 = vsub.f32 %v1679, %v1972
    %v1983 = vsub.f32 %v1684, %v1974
    %v1984 = vsub.f32 %v1689, %v1976
    %v1985 = vmul.f32 %v1981, 1.442695
    %v1986 = vpow.pop %v1985
    %v1987 = vmul.f32 %v1982, 1.442695
    %v1988 = vpow.pop %v1987
    %v1989 = vmul.f32 %v1983, 1.442695
    %v1990 = vpow.pop %v1989
    %v1991 = vmul.f32 %v1984, 1.442695
    %v1992 = vpow.pop %v1991
    %1997 = vrot.lane.b32.xlu0 %v1938, 126
    %v1998 = vpop.permute.xlu0 %1997
    %1999 = vrot.lane.b32.xlu0 %v1940, 126
    %v2000 = vpop.permute.xlu0 %1999
    %2001 = vrot.lane.b32.xlu0 %v1942, 126
    %v2002 = vpop.permute.xlu0 %2001
    %2003 = vrot.lane.b32.xlu0 %v1944, 126
    %v2004 = vpop.permute.xlu0 %2003
    %v2009 = vadd.f32 %v1910, %v1998
    %v2010 = vadd.f32 %v1912, %v2000
    %v2011 = vadd.f32 %v1914, %v2002
    %v2012 = vadd.f32 %v1916, %v2004
    %2017 = vrot.lane.b32.xlu0 %v1962, 124
    %v2018 = vpop.permute.xlu0 %2017
    %2019 = vrot.lane.b32.xlu0 %v1964, 124
    %v2020 = vpop.permute.xlu0 %2019
    %2021 = vrot.lane.b32.xlu0 %v1966, 124
    %v2022 = vpop.permute.xlu0 %2021
    %2023 = vrot.lane.b32.xlu0 %v1968, 124
    %v2024 = vpop.permute.xlu0 %2023
    %v2029 = vadd.f32 %v2009, %v2018
    %v2030 = vadd.f32 %v2010, %v2020
    %v2031 = vadd.f32 %v2011, %v2022
    %v2032 = vadd.f32 %v2012, %v2024
    %2037 = vrot.lane.b32.xlu0 %v1986, 122
    %v2038 = vpop.permute.xlu0 %2037
    %2039 = vrot.lane.b32.xlu0 %v1988, 122
    %v2040 = vpop.permute.xlu0 %2039
    %2041 = vrot.lane.b32.xlu0 %v1990, 122
    %v2042 = vpop.permute.xlu0 %2041
    %2043 = vrot.lane.b32.xlu0 %v1992, 122
    %v2044 = vpop.permute.xlu0 %2043
    %v2049 = vadd.f32 %v2029, %v2038
    %v2050 = vadd.f32 %v2030, %v2040
    %v2051 = vadd.f32 %v2031, %v2042
    %v2052 = vadd.f32 %v2032, %v2044
    %v2053 = vrcp.pop %v2049
    %v2054 = vrcp.pop %v2050
    %v2055 = vrcp.pop %v2051
    %v2056 = vrcp.pop %v2052
    %2061 = vrot.lane.b32.xlu0 %v1435, 64
    %v2062 = vpop.permute.xlu0 %2061
    %2063 = vrot.lane.b32.xlu0 %v1440, 64
    %v2064 = vpop.permute.xlu0 %2063
    %2065 = vrot.lane.b32.xlu0 %v1445, 64
    %v2066 = vpop.permute.xlu0 %2065
    %2067 = vrot.lane.b32.xlu0 %v1450, 64
    %v2068 = vpop.permute.xlu0 %2067
    %v2073 = vadd.f32 %v40, %v2062
    %v2074 = vadd.f32 %v41, %v2064
    %v2075 = vadd.f32 %v42, %v2066
    %v2076 = vadd.f32 %v43, %v2068
    %2081 = vrot.lane.b32.xlu0 %v1910, 64
    %v2082 = vpop.permute.xlu0 %2081
    %2083 = vrot.lane.b32.xlu0 %v1912, 64
    %v2084 = vpop.permute.xlu0 %2083
    %2085 = vrot.lane.b32.xlu0 %v1914, 64
    %v2086 = vpop.permute.xlu0 %2085
    %2087 = vrot.lane.b32.xlu0 %v1916, 64
    %v2088 = vpop.permute.xlu0 %2087
    %v2093 = vmul.f32 %v2073, %v2082
    %v2094 = vmul.f32 %v2074, %v2084
    %v2095 = vmul.f32 %v2075, %v2086
    %v2096 = vmul.f32 %v2076, %v2088
    %2097 = vrot.lane.b32.xlu0 %v1435, 62
    %v2098 = vpop.permute.xlu0 %2097
    %2099 = vrot.lane.b32.xlu0 %v1440, 62
    %v2100 = vpop.permute.xlu0 %2099
    %2101 = vrot.lane.b32.xlu0 %v1445, 62
    %v2102 = vpop.permute.xlu0 %2101
    %2103 = vrot.lane.b32.xlu0 %v1450, 62
    %v2104 = vpop.permute.xlu0 %2103
    %v2109 = vadd.f32 %v40, %v2098
    %v2110 = vadd.f32 %v41, %v2100
    %v2111 = vadd.f32 %v42, %v2102
    %v2112 = vadd.f32 %v43, %v2104
    %2113 = vrot.lane.b32.xlu0 %v1938, 62
    %v2114 = vpop.permute.xlu0 %2113
    %2115 = vrot.lane.b32.xlu0 %v1940, 62
    %v2116 = vpop.permute.xlu0 %2115
    %2117 = vrot.lane.b32.xlu0 %v1942, 62
    %v2118 = vpop.permute.xlu0 %2117
    %2119 = vrot.lane.b32.xlu0 %v1944, 62
    %v2120 = vpop.permute.xlu0 %2119
    %v2125 = vmul.f32 %v2109, %v2114
    %v2126 = vmul.f32 %v2110, %v2116
    %v2127 = vmul.f32 %v2111, %v2118
    %v2128 = vmul.f32 %v2112, %v2120
    %v2129 = vadd.f32 %v2093, %v2125
    %v2130 = vadd.f32 %v2094, %v2126
    %v2131 = vadd.f32 %v2095, %v2127
    %v2132 = vadd.f32 %v2096, %v2128
    %2133 = vrot.lane.b32.xlu0 %v1435, 60
    %v2134 = vpop.permute.xlu0 %2133
    %2135 = vrot.lane.b32.xlu0 %v1440, 60
    %v2136 = vpop.permute.xlu0 %2135
    %2137 = vrot.lane.b32.xlu0 %v1445, 60
    %v2138 = vpop.permute.xlu0 %2137
    %2139 = vrot.lane.b32.xlu0 %v1450, 60
    %v2140 = vpop.permute.xlu0 %2139
    %v2145 = vadd.f32 %v40, %v2134
    %v2146 = vadd.f32 %v41, %v2136
    %v2147 = vadd.f32 %v42, %v2138
    %v2148 = vadd.f32 %v43, %v2140
    %2149 = vrot.lane.b32.xlu0 %v1962, 60
    %v2150 = vpop.permute.xlu0 %2149
    %2151 = vrot.lane.b32.xlu0 %v1964, 60
    %v2152 = vpop.permute.xlu0 %2151
    %2153 = vrot.lane.b32.xlu0 %v1966, 60
    %v2154 = vpop.permute.xlu0 %2153
    %2155 = vrot.lane.b32.xlu0 %v1968, 60
    %v2156 = vpop.permute.xlu0 %2155
    %v2161 = vmul.f32 %v2145, %v2150
    %v2162 = vmul.f32 %v2146, %v2152
    %v2163 = vmul.f32 %v2147, %v2154
    %v2164 = vmul.f32 %v2148, %v2156
    %v2165 = vadd.f32 %v2129, %v2161
    %v2166 = vadd.f32 %v2130, %v2162
    %v2167 = vadd.f32 %v2131, %v2163
    %v2168 = vadd.f32 %v2132, %v2164
    %2169 = vrot.lane.b32.xlu0 %v1435, 58
    %v2170 = vpop.permute.xlu0 %2169
    %2171 = vrot.lane.b32.xlu0 %v1440, 58
    %v2172 = vpop.permute.xlu0 %2171
    %2173 = vrot.lane.b32.xlu0 %v1445, 58
    %v2174 = vpop.permute.xlu0 %2173
    %2175 = vrot.lane.b32.xlu0 %v1450, 58
    %v2176 = vpop.permute.xlu0 %2175
    %v2181 = vadd.f32 %v40, %v2170
    %v2182 = vadd.f32 %v41, %v2172
    %v2183 = vadd.f32 %v42, %v2174
    %v2184 = vadd.f32 %v43, %v2176
    %2185 = vrot.lane.b32.xlu0 %v1986, 58
    %v2186 = vpop.permute.xlu0 %2185
    %2187 = vrot.lane.b32.xlu0 %v1988, 58
    %v2188 = vpop.permute.xlu0 %2187
    %2189 = vrot.lane.b32.xlu0 %v1990, 58
    %v2190 = vpop.permute.xlu0 %2189
    %2191 = vrot.lane.b32.xlu0 %v1992, 58
    %v2192 = vpop.permute.xlu0 %2191
    %v2197 = vmul.f32 %v2181, %v2186
    %v2198 = vmul.f32 %v2182, %v2188
    %v2199 = vmul.f32 %v2183, %v2190
    %v2200 = vmul.f32 %v2184, %v2192
    %v2201 = vadd.f32 %v2165, %v2197
    %v2202 = vadd.f32 %v2166, %v2198
    %v2203 = vadd.f32 %v2167, %v2199
    %v2204 = vadd.f32 %v2168, %v2200
    %2209 = vrot.lane.b32.xlu0 %v2053, 64
    %v2210 = vpop.permute.xlu0 %2209
    %2211 = vrot.lane.b32.xlu0 %v2054, 64
    %v2212 = vpop.permute.xlu0 %2211
    %2213 = vrot.lane.b32.xlu0 %v2055, 64
    %v2214 = vpop.permute.xlu0 %2213
    %2215 = vrot.lane.b32.xlu0 %v2056, 64
    %v2216 = vpop.permute.xlu0 %2215
    %v2221 = vmul.f32 %v2201, %v2210
    %v2222 = vmul.f32 %v2202, %v2212
    %v2223 = vmul.f32 %v2203, %v2214
    %v2224 = vmul.f32 %v2204, %v2216
    %2229 = vrot.lane.b32.xlu0 %v2221, 96
    %v2230 = vpop.permute.xlu0 %2229
    %2231 = vrot.lane.b32.xlu0 %v2222, 96
    %v2232 = vpop.permute.xlu0 %2231
    %2233 = vrot.lane.b32.xlu0 %v2223, 96
    %v2234 = vpop.permute.xlu0 %2233
    %2235 = vrot.lane.b32.xlu0 %v2224, 96
    %v2236 = vpop.permute.xlu0 %2235
    %v2241 = vsel %vm59, %v1849, %v2230
    %v2242 = vsel %vm59, %v1850, %v2232
    %v2243 = vsel %vm59, %v1851, %v2234
    %v2244 = vsel %vm59, %v1852, %v2236
    %vm2245 = vcmask 277504
    %v2246 = vsel %vm2245, %v2241, 0.0
    %v2247 = vsel %vm2245, %v2242, 0.0
    %v2248 = vsel %vm2245, %v2243, 0.0
    %v2249 = vsel %vm2245, %v2244, 0.0
    %2250 = vst [vmem:[#allocation7] sm:$0xff] %v2246
    %2251 = vst [vmem:[#allocation7 + $0x8] sm:$0xff] %v2247
    %2252 = vst [vmem:[#allocation7 + $0x10] sm:$0xff] %v2248
    %2253 = vst [vmem:[#allocation7 + $0x18] sm:$0xff] %v2249
    // Predicated region
    $region18: #{tpu_custom_call.1} parent=1 // pred_check
      _
    $region19: #{tpu_custom_call.1} parent=1 // pred_check_branch
      %2255 = sbr.rel (0) target = $region21
    $region20: #{tpu_custom_call.1} parent=1 // pred_region
      %s2257 = ssub.s32 512, 512
      %2258 = vsyncadd [#allocation4], %s2257
      %s2259 = sshll.u32 [#allocation7], 4
      %s2260 = int_to_ptr.vmem [resolvable:$true] %s2259
      %2265 = dma.vmem_to_hbm [thread:$0]  %s2260, 512, %s2, [#allocation4], 128, 128, 8
    $region21: #{tpu_custom_call.1} parent=1 // pred_fallthru
      _
    // Predicated region
    $region22: #{tpu_custom_call.1} parent=1 // pred_check
      _
    $region23: #{tpu_custom_call.1} parent=1 // pred_check_branch
      %2267 = sbr.rel (0) target = $region25
    $region24: #{tpu_custom_call.1} parent=1 // pred_region
      %2268 = dma.done [#allocation4], 512
    $region25: #{tpu_custom_call.1} parent=1 // pred_fallthru
      _
    %2269 = vsyncpa [#allocation3], 1
    %2270 = vsyncpa [#allocation6], 1
    %2271 = vsyncpa [#allocation4], 1

</llo_original>
